<compile_context>
chip_gen: v7x
topology: tpu7x:2x2x1
jax: 0.10.0
libtpu: 0.0.40
codegen_flags: <defaults>
</compile_context>

<pallas_src>
import jax
import jax.numpy as jnp
from jax.experimental import pallas as pl
from jax.experimental.pallas import tpu as pltpu

_CLASS_TILE = 8            # f32 sublane-native class tile
_FRAME_TILE_I = 512        # threshold-frame (i) tile; j re-streaming ∝ 1/Ti
_FRAME_TILE_J = 256        # comparison-frame (j) tile; bounds per-step mask
_NEG_PAD = -3.0e38         # below any real logit: frame padding + label mask
_VMEM_LIMIT = 48 * 1024 * 1024   # fits v7x 64 MiB VMEM; fine on v5e/v6e


def _round_up(x, m):
    return ((x + m - 1) // m) * m


def _ap_contrib_kernel(s_i_ref, t_i_ref, s_j_ref, t_j_ref, contrib_ref,
                       tp_ref, tot_ref):
    """One (class-tile, i-tile, j-tile) block of the pairwise AP reduction.

    s_i_ref     : (TC, Ti)  f32  scores at the threshold frames i
    t_i_ref     : (TC, Ti)  f32  labels at the threshold frames i
    s_j_ref     : (TC, Tj)  f32  scores at the comparison frames j
    t_j_ref     : (TC, Tj)  f32  labels at the comparison frames j
    contrib_ref : (TC, Ti)  f32  out: t_i * precision_i (written at last j)
    tp_ref      : (TC, Ti)  f32  scratch: running #{j : t_j=1, s_j >= s_i}
    tot_ref     : (TC, Ti)  f32  scratch: running #{j : s_j >= s_i}
    """
    j = pl.program_id(2)

    @pl.when(j == 0)
    def _init():
        tp_ref[...] = jnp.zeros_like(tp_ref)
        tot_ref[...] = jnp.zeros_like(tot_ref)

    s_row = s_i_ref[...][:, None, :]        # (TC, 1, Ti)   i lane-dense
    s_j = s_j_ref[...]                      # (TC, Tj)
    # Comparison scores restricted to positive-label frames: negatives get a
    # sentinel below every real score, so the "true positive" count is just
    # another count of (score >= threshold) — computed on the tiny (TC, Tj)
    # vector before any broadcast.
    ps_j = jnp.where(t_j_ref[...] > 0.5, s_j, _NEG_PAD)
    s_col = s_j[:, :, None]                 # (TC, Tj, 1)   j on sublanes
    ps_col = ps_j[:, :, None]

    # Canonical (TC, Tj, Ti) masks: reductions over axis 1 are sublane-axis
    # VALU add trees + one XLU reduce, results already lane-dense in Ti.
    ge_all = (s_col >= s_row).astype(jnp.float32)    # retrieved @ threshold i
    ge_pos = (ps_col >= s_row).astype(jnp.float32)   # true positives @ i

    tot_ref[...] += jnp.sum(ge_all, axis=1)
    tp_ref[...] += jnp.sum(ge_pos, axis=1)

    @pl.when(j == pl.num_programs(2) - 1)
    def _finalize():
        # tot >= 1 always: every frame (padded ones included) matches itself,
        # so the exact divide is safe; approx reciprocal deliberately avoided.
        prec = tp_ref[...] / tot_ref[...]
        contrib_ref[...] = t_i_ref[...] * prec       # only positive frames count


def per_class_average_precision(scores_cn, targets_cn,
                                class_tile=_CLASS_TILE,
                                frame_tile_i=_FRAME_TILE_I,
                                frame_tile_j=_FRAME_TILE_J):
    """Per-class average precision for scores/targets laid out [classes, frames].

    Returns (ap[C], npos[C]) as float32.
    """
    assert frame_tile_i % frame_tile_j == 0
    scores_cn = scores_cn.astype(jnp.float32)
    targets_cn = targets_cn.astype(jnp.float32)
    C, N = scores_cn.shape

    n128 = _round_up(N, 128)
    if n128 <= frame_tile_i:
        ti = tj = n128                    # small inputs: single i / j tile
    else:
        ti, tj = frame_tile_i, frame_tile_j
    Cp = _round_up(C, class_tile)
    Np = _round_up(N, ti)                 # ti is a multiple of tj

    # Padded frames get a score lower than any real logit so they never fall
    # into any real frame's ">= threshold" set; padded labels are 0 so they
    # never contribute to tp / npos / the output sum.
    scores_p = jnp.pad(scores_cn, ((0, Cp - C), (0, Np - N)),
                       constant_values=_NEG_PAD)
    targets_p = jnp.pad(targets_cn, ((0, Cp - C), (0, Np - N)))

    grid = (Cp // class_tile, Np // ti, Np // tj)

    contrib = pl.pallas_call(
        _ap_contrib_kernel,
        out_shape=jax.ShapeDtypeStruct((Cp, Np), jnp.float32),
        grid_spec=pltpu.PrefetchScalarGridSpec(
            num_scalar_prefetch=0,
            grid=grid,
            in_specs=[
                pl.BlockSpec((class_tile, ti), lambda c, i, j: (c, i)),
                pl.BlockSpec((class_tile, ti), lambda c, i, j: (c, i)),
                pl.BlockSpec((class_tile, tj), lambda c, i, j: (c, j)),
                pl.BlockSpec((class_tile, tj), lambda c, i, j: (c, j)),
            ],
            out_specs=pl.BlockSpec((class_tile, ti), lambda c, i, j: (c, i)),
            scratch_shapes=[pltpu.VMEM((class_tile, ti), jnp.float32),
                            pltpu.VMEM((class_tile, ti), jnp.float32)],
        ),
        compiler_params=pltpu.CompilerParams(
            dimension_semantics=("parallel", "parallel", "arbitrary"),
            vmem_limit_bytes=_VMEM_LIMIT,
        ),
    )(scores_p, targets_p, scores_p, targets_p)

    ap_num = jnp.sum(contrib, axis=-1)    # padded entries are exactly 0
    npos = jnp.sum(targets_p, axis=-1)
    ap = ap_num / jnp.maximum(npos, 1.0)
    return ap[:C], npos[:C]


@jax.jit
def ant_evaluate(pred_logits, targets, ant_pred_logits, ant_targets):
    """JAX/Pallas equivalent of ANT_Evaluate.eval()'s metric computation.

    pred_logits     : [N, C]          OAD logits (accumulated over the loader)
    targets         : [N, C]          binary per-frame labels
    ant_pred_logits : [N, STEPS, C]   anticipation logits
    ant_targets     : [N, STEPS, C]   binary anticipation labels

    Returns (oad_mAP, anticipation_mAPs[STEPS], mean_anticipation_mAP); the
    module's forward() return value corresponds to mean_anticipation_mAP.
    """
    N, C = pred_logits.shape
    _, STEPS, _ = ant_pred_logits.shape

    # Fuse OAD + every anticipation step into ONE kernel launch: fold the step
    # axis into the class axis and concatenate with the OAD logits so the
    # pallas_call sees [(1 + STEPS) * C, N] class-major scores/targets.
    oad_s = pred_logits.T                                          # (C, N)
    oad_t = targets.T
    ant_s = jnp.transpose(ant_pred_logits, (1, 2, 0)).reshape(STEPS * C, N)
    ant_t = jnp.transpose(ant_targets, (1, 2, 0)).reshape(STEPS * C, N)
    all_s = jnp.concatenate([oad_s, ant_s], axis=0)
    all_t = jnp.concatenate([oad_t, ant_t], axis=0)

    ap, npos = per_class_average_precision(all_s, all_t)

    ap = ap.reshape(1 + STEPS, C)
    has_pos = (npos > 0).astype(jnp.float32).reshape(1 + STEPS, C)
    # mAP over classes that have at least one positive frame (matches
    # perframe_average_precision, metric='AP', data_processing=None path).
    # TODO(synk): thumos_postprocessing (ambiguous-frame masking) is host-side
    # bookkeeping and is not applied here (non-THUMOS / None path).
    group_maps = jnp.sum(ap * has_pos, axis=1) / jnp.maximum(
        jnp.sum(has_pos, axis=1), 1.0)

    oad_map = group_maps[0]
    step_maps = group_maps[1:]
    mean_ant_map = jnp.mean(step_maps)
    return oad_map, step_maps, mean_ant_map


def _reference_mean_ap(scores_nc, targets_nc):
    """Pure-JAX pairwise AP reference (small sizes only, for validation)."""
    s = scores_nc.astype(jnp.float32).T
    t = targets_nc.astype(jnp.float32).T
    ge = (s[:, None, :] >= s[:, :, None]).astype(jnp.float32)
    tp = jnp.sum(ge * t[:, None, :], axis=-1)
    tot = jnp.sum(ge, axis=-1)
    prec = tp / jnp.maximum(tot, 1.0)
    npos = jnp.sum(t, axis=-1)
    ap = jnp.sum(t * prec, axis=-1) / jnp.maximum(npos, 1.0)
    has = (npos > 0).astype(jnp.float32)
    return jnp.sum(ap * has) / jnp.maximum(jnp.sum(has), 1.0)


if __name__ == "__main__":
    key = jax.random.PRNGKey(0)
    k1, k2, k3, k4 = jax.random.split(key, 4)

    NUM_FRAMES = 128   # total frames accumulated over the "dataloader"
    NUM_CLASSES = 8
    ANT_STEPS = 4

    # Synthetic stand-ins for the model outputs / dataset labels (the original
    # module produces these by running the model over a dataloader).
    pred_logits = jax.random.normal(k1, (NUM_FRAMES, NUM_CLASSES), jnp.float32)
    targets = (jax.random.uniform(k2, (NUM_FRAMES, NUM_CLASSES)) < 0.3).astype(
        jnp.float32)
    ant_pred_logits = jax.random.normal(
        k3, (NUM_FRAMES, ANT_STEPS, NUM_CLASSES), jnp.float32)
    ant_targets = (
        jax.random.uniform(k4, (NUM_FRAMES, ANT_STEPS, NUM_CLASSES)) < 0.3
    ).astype(jnp.float32)

    oad_map, step_maps, mean_ant_map = ant_evaluate(
        pred_logits, targets, ant_pred_logits, ant_targets)
    jax.block_until_ready(mean_ant_map)

    # Validate against a pure-JAX reference of the same pairwise formulation.
    ref_oad = _reference_mean_ap(pred_logits, targets)
    ref_steps = jnp.stack([
        _reference_mean_ap(ant_pred_logits[:, s, :], ant_targets[:, s, :])
        for s in range(ANT_STEPS)])
    assert jnp.allclose(oad_map, ref_oad, rtol=1e-4, atol=1e-5)
    assert jnp.allclose(step_maps, ref_steps, rtol=1e-4, atol=1e-5)

    # sanity: mAPs must be finite and inside [0, 1]
    assert bool(jnp.isfinite(oad_map)) and 0.0 <= float(oad_map) <= 1.0
    assert bool(jnp.all(jnp.isfinite(step_maps)))
    assert bool(jnp.isfinite(mean_ant_map)) and 0.0 <= float(mean_ant_map) <= 1.0

    print("KERNEL_OK")
</pallas_src>

<mosaic_0001>
module attributes {stable_mosaic.version = 11 : i64} {
  func.func @_ap_contrib_kernel(%arg0: i32, %arg1: i32, %arg2: i32, %arg3: memref<8x128xf32, #tpu.memory_space<vmem>>, %arg4: memref<8x128xf32, #tpu.memory_space<vmem>>, %arg5: memref<8x128xf32, #tpu.memory_space<vmem>>, %arg6: memref<8x128xf32, #tpu.memory_space<vmem>>, %arg7: memref<8x128xf32, #tpu.memory_space<vmem>>, %arg8: memref<8x128xf32, #tpu.memory_space<vmem>>, %arg9: memref<8x128xf32, #tpu.memory_space<vmem>>) attributes {dimension_semantics = [#tpu.dimension_semantics<parallel>, #tpu.dimension_semantics<parallel>, #tpu.dimension_semantics<arbitrary>], iteration_bounds = array<i64: 5, 1, 1>, scalar_prefetch = 0 : i64, scratch_operands = 2 : i64, tpu.core_type = #tpu.core_type<tc>, window_params = [{transform_indices = @transform_0, window_bounds = array<i64: 8, 128>}, {transform_indices = @transform_1, window_bounds = array<i64: 8, 128>}, {transform_indices = @transform_2, window_bounds = array<i64: 8, 128>}, {transform_indices = @transform_3, window_bounds = array<i64: 8, 128>}, {transform_indices = @transform_4, window_bounds = array<i64: 8, 128>}]} {
    %c0_i32 = arith.constant 0 : i32
    %0 = arith.cmpi eq, %arg2, %c0_i32 : i32
    %1 = arith.extui %0 : i1 to i32
    %c0_i32_0 = arith.constant 0 : i32
    %2 = arith.cmpi ne, %1, %c0_i32_0 : i32
    scf.if %2 {
      %cst_19 = arith.constant 0.000000e+00 : f32
      %34 = vector.broadcast %cst_19 : f32 to vector<8x128xf32>
      %c0_20 = arith.constant 0 : index
      %c0_21 = arith.constant 0 : index
      %35 = vector.load %arg8[%c0_20, %c0_21] : memref<8x128xf32, #tpu.memory_space<vmem>>, vector<8x128xf32>
      tpu.vector_store %arg8[%c0_20, %c0_21], %34 {strides = array<i32>} : memref<8x128xf32, #tpu.memory_space<vmem>>, vector<8x128xf32>,
      %cst_22 = arith.constant 0.000000e+00 : f32
      %36 = vector.broadcast %cst_22 : f32 to vector<8x128xf32>
      %c0_23 = arith.constant 0 : index
      %c0_24 = arith.constant 0 : index
      %37 = vector.load %arg9[%c0_23, %c0_24] : memref<8x128xf32, #tpu.memory_space<vmem>>, vector<8x128xf32>
      tpu.vector_store %arg9[%c0_23, %c0_24], %36 {strides = array<i32>} : memref<8x128xf32, #tpu.memory_space<vmem>>, vector<8x128xf32>,
    } else {
    }
    %c0 = arith.constant 0 : index
    %c0_1 = arith.constant 0 : index
    %3 = vector.load %arg3[%c0, %c0_1] : memref<8x128xf32, #tpu.memory_space<vmem>>, vector<8x128xf32>
    %4 = vector.shape_cast %3 : vector<8x128xf32> to vector<8x1x128xf32>
    %c0_2 = arith.constant 0 : index
    %c0_3 = arith.constant 0 : index
    %5 = vector.load %arg5[%c0_2, %c0_3] : memref<8x128xf32, #tpu.memory_space<vmem>>, vector<8x128xf32>
    %c0_4 = arith.constant 0 : index
    %c0_5 = arith.constant 0 : index
    %6 = vector.load %arg6[%c0_4, %c0_5] : memref<8x128xf32, #tpu.memory_space<vmem>>, vector<8x128xf32>
    %cst = arith.constant 5.000000e-01 : f32
    %7 = vector.broadcast %cst : f32 to vector<8x128xf32>
    %8 = arith.cmpf ogt, %6, %7 : vector<8x128xf32>
    %cst_6 = arith.constant -3.000000e+38 : f32
    %9 = vector.broadcast %cst_6 : f32 to vector<8x128xf32>
    %10 = arith.select %8, %5, %9 : vector<8x128xi1>, vector<8x128xf32>
    %11 = vector.shape_cast %5 : vector<8x128xf32> to vector<8x128x1xf32>
    %12 = vector.shape_cast %10 : vector<8x128xf32> to vector<8x128x1xf32>
    %13 = vector.broadcast %11 : vector<8x128x1xf32> to vector<8x128x128xf32>
    %14 = vector.broadcast %4 : vector<8x1x128xf32> to vector<8x128x128xf32>
    %15 = arith.cmpf oge, %13, %14 : vector<8x128x128xf32>
    %16 = arith.extui %15 : vector<8x128x128xi1> to vector<8x128x128xi32>
    %17 = arith.sitofp %16 : vector<8x128x128xi32> to vector<8x128x128xf32>
    %18 = vector.broadcast %12 : vector<8x128x1xf32> to vector<8x128x128xf32>
    %19 = vector.broadcast %4 : vector<8x1x128xf32> to vector<8x128x128xf32>
    %20 = arith.cmpf oge, %18, %19 : vector<8x128x128xf32>
    %21 = arith.extui %20 : vector<8x128x128xi1> to vector<8x128x128xi32>
    %22 = arith.sitofp %21 : vector<8x128x128xi32> to vector<8x128x128xf32>
    %c0_7 = arith.constant 0 : index
    %c0_8 = arith.constant 0 : index
    %23 = vector.load %arg9[%c0_7, %c0_8] : memref<8x128xf32, #tpu.memory_space<vmem>>, vector<8x128xf32>
    %cst_9 = arith.constant dense<0.000000e+00> : vector<8x128xf32>
    %24 = vector.multi_reduction <add>, %17, %cst_9 [1] : vector<8x128x128xf32> to vector<8x128xf32>
    %25 = arith.addf %23, %24 : vector<8x128xf32>
    %c0_10 = arith.constant 0 : index
    %c0_11 = arith.constant 0 : index
    %26 = vector.load %arg9[%c0_10, %c0_11] : memref<8x128xf32, #tpu.memory_space<vmem>>, vector<8x128xf32>
    tpu.vector_store %arg9[%c0_10, %c0_11], %25 {strides = array<i32>} : memref<8x128xf32, #tpu.memory_space<vmem>>, vector<8x128xf32>,
    %c0_12 = arith.constant 0 : index
    %c0_13 = arith.constant 0 : index
    %27 = vector.load %arg8[%c0_12, %c0_13] : memref<8x128xf32, #tpu.memory_space<vmem>>, vector<8x128xf32>
    %cst_14 = arith.constant dense<0.000000e+00> : vector<8x128xf32>
    %28 = vector.multi_reduction <add>, %22, %cst_14 [1] : vector<8x128x128xf32> to vector<8x128xf32>
    %29 = arith.addf %27, %28 : vector<8x128xf32>
    %c0_15 = arith.constant 0 : index
    %c0_16 = arith.constant 0 : index
    %30 = vector.load %arg8[%c0_15, %c0_16] : memref<8x128xf32, #tpu.memory_space<vmem>>, vector<8x128xf32>
    tpu.vector_store %arg8[%c0_15, %c0_16], %29 {strides = array<i32>} : memref<8x128xf32, #tpu.memory_space<vmem>>, vector<8x128xf32>,
    %c0_i32_17 = arith.constant 0 : i32
    %31 = arith.cmpi eq, %arg2, %c0_i32_17 : i32
    %32 = arith.extui %31 : i1 to i32
    %c0_i32_18 = arith.constant 0 : i32
    %33 = arith.cmpi ne, %32, %c0_i32_18 : i32
    scf.if %33 {
      %c0_19 = arith.constant 0 : index
      %c0_20 = arith.constant 0 : index
      %34 = vector.load %arg8[%c0_19, %c0_20] : memref<8x128xf32, #tpu.memory_space<vmem>>, vector<8x128xf32>
      %c0_21 = arith.constant 0 : index
      %c0_22 = arith.constant 0 : index
      %35 = vector.load %arg9[%c0_21, %c0_22] : memref<8x128xf32, #tpu.memory_space<vmem>>, vector<8x128xf32>
      %36 = arith.divf %34, %35 : vector<8x128xf32>
      %c0_23 = arith.constant 0 : index
      %c0_24 = arith.constant 0 : index
      %37 = vector.load %arg4[%c0_23, %c0_24] : memref<8x128xf32, #tpu.memory_space<vmem>>, vector<8x128xf32>
      %38 = arith.mulf %37, %36 : vector<8x128xf32>
      %c0_25 = arith.constant 0 : index
      %c0_26 = arith.constant 0 : index
      %39 = vector.load %arg7[%c0_25, %c0_26] : memref<8x128xf32, #tpu.memory_space<vmem>>, vector<8x128xf32>
      tpu.vector_store %arg7[%c0_25, %c0_26], %38 {strides = array<i32>} : memref<8x128xf32, #tpu.memory_space<vmem>>, vector<8x128xf32>,
    } else {
    }
    return
  }
  func.func @transform_0(%arg0: i32, %arg1: i32, %arg2: i32) -> (i32, i32) {
    %c0_i32 = arith.constant 0 : i32
    return %arg0, %arg1 : i32, i32
  }
  func.func @transform_1(%arg0: i32, %arg1: i32, %arg2: i32) -> (i32, i32) {
    %c0_i32 = arith.constant 0 : i32
    return %arg0, %arg1 : i32, i32
  }
  func.func @transform_2(%arg0: i32, %arg1: i32, %arg2: i32) -> (i32, i32) {
    %c0_i32 = arith.constant 0 : i32
    return %arg0, %arg2 : i32, i32
  }
  func.func @transform_3(%arg0: i32, %arg1: i32, %arg2: i32) -> (i32, i32) {
    %c0_i32 = arith.constant 0 : i32
    return %arg0, %arg2 : i32, i32
  }
  func.func @transform_4(%arg0: i32, %arg1: i32, %arg2: i32) -> (i32, i32) {
    %c0_i32 = arith.constant 0 : i32
    return %arg0, %arg1 : i32, i32
  }
}

</mosaic_0001>

<llo_original>
// kernel: ant_evaluate.1
$region0: #{ant_evaluate.1}
  #allocation0 [shape = 'u32[]', space=smem, size = 0x4, offset = 0x4, fixed_abs, tag = 'smem constant byte address 0x4 - core index']
  #allocation1 [shape = 'u32[144,128]{1,0:T(1,128)}', space=vmem, size = 0x12000, scoped, tag = 'internal scratch']
  #allocation2 [shape = 'f32[8,128]{1,0:T(8,128)}', space=vmem, size = 0x1000, scoped, tag = 'scratch operand']
  #allocation3 [shape = 'f32[8,128]{1,0:T(8,128)}', space=vmem, size = 0x1000, scoped, tag = 'scratch operand']
  %s0 = inlined_call_operand.vmem [shape: f32[40,128], index: 0, kind: input, shape index: {}, may-alias: {0,2}]
  %s1 = inlined_call_operand.vmem [shape: f32[40,128], index: 1, kind: input, shape index: {}, may-alias: {1,3}]
  %s2 = inlined_call_operand.vmem [shape: f32[40,128], index: 2, kind: input, shape index: {}, may-alias: {0,2}]
  %s3 = inlined_call_operand.vmem [shape: f32[40,128], index: 3, kind: input, shape index: {}, may-alias: {1,3}]
  %s4 = inlined_call_operand.vmem [shape: f32[40,128], index: 4, kind: output, shape index: {}]
  %s5 = sld [smem:[#allocation0]]
  $region57: #{ant_evaluate.1} parent=0
    _
  %s7 = ssub.s32 1, %s5
  %s8 = scalar_select 0, %s7, %s5
  loop: start=0, step=1, limit=7
  $region2: #{ant_evaluate.1} parent=0 // loop_pre_header
    _
  $region3: #{ant_evaluate.1} parent=0 // loop_header
    %s10 = sphi 0, %s14
    %p11 = scmp.ge.s32.totalorder %s10, 7
    %s17 = sphi 0, %s36
    %s18 = sphi 0, %s32
    %s19 = sphi 0, %s28
    %s20 = sphi 0, %s17
    %s21 = sphi 0, %s18
    %s22 = sphi 0, %s19
    %s23 = sphi 0, %s20
    %s24 = sphi 0, %s21
    %s25 = sphi 0, %s22
    %s41 = sphi 0, %s43
    %s44 = sphi 0, %s41
    %s45 = sphi 0, %s44
    %s61 = sphi 0, %s45
    %s69 = sphi 0, %s71
    %s72 = sphi 0, %s69
    %s73 = sphi 0, %s72
    %s89 = sphi 0, %s73
    %s97 = sphi 0, %s99
    %s100 = sphi 0, %s97
    %s101 = sphi 0, %s100
    %s117 = sphi 0, %s101
    %s125 = sphi 0, %s127
    %s128 = sphi 0, %s125
    %s129 = sphi 0, %s128
    %s145 = sphi 0, %s129
    %s153 = sphi 0, %s155
    %s156 = sphi 0, %s153
    %s157 = sphi 0, %s156
    %s173 = sphi 0, %s157
  $region4: #{ant_evaluate.1} parent=0 // loop_header_branch
    %13 = sbr.rel (%p11) target = $region8
  $region5: #{ant_evaluate.1} parent=0 // loop_body
    %s15 = ssub.s32 %s10, 1
    %s16 = ssub.s32 %s10, 2
    %s26 = sadd.s32 1, %s19
    %p27 = scmp.ge.s32.totalorder %s26, 1
    %s28 = scalar_select %p27, 0, %s26
    %s29 = sadd.s32 1, %s18
    %s30 = scalar_select %p27, %s29, %s18
    %p31 = scmp.ge.s32.totalorder %s30, 1
    %s32 = scalar_select %p31, 0, %s30
    %s33 = sadd.s32 1, %s17
    %s34 = scalar_select %p31, %s33, %s17
    %p35 = scmp.ge.s32.totalorder %s34, 5
    %s36 = scalar_select %p35, 0, %s34
    %s37 = ssub.s32 %s17, %s36
    %s38 = ssub.s32 %s18, %s32
    %s39 = sor.u32 %s37, %s38
    %p40 = scmp.eq.s32.totalorder %s39, 0
    %s42 = sadd.s32 %s41, 1
    %s43 = scalar_select %p40, %s41, %s42
    %p46 = pneg %p40
    %p47 = scmp.eq.s32.totalorder %s10, 4
    %p48 = por %p46, %p47
    %p49 = scmp.ne.s32.totalorder %s41, %s44
    %p50 = scmp.eq.s32.totalorder %s10, 0
    %p51 = por %p49, %p50
    %p52 = scmp.ne.s32.totalorder %s41, %s44
    %p53 = scmp.eq.s32.totalorder %s15, 4
    %p54 = por %p52, %p53
    %p55 = scmp.ne.s32.totalorder %s44, %s45
    %p56 = scmp.eq.s32.totalorder %s15, 0
    %p57 = por %p55, %p56
    %p58 = scmp.ne.s32.totalorder %s44, %s45
    %p59 = scmp.eq.s32.totalorder %s16, 4
    %p60 = por %p58, %p59
    %p62 = scmp.ne.s32.totalorder %s45, %s61
    %p63 = scmp.eq.s32.totalorder %s16, 0
    %p64 = por %p62, %p63
    %s65 = ssub.s32 %s17, %s36
    %s66 = ssub.s32 %s18, %s32
    %s67 = sor.u32 %s65, %s66
    %p68 = scmp.eq.s32.totalorder %s67, 0
    %s70 = sadd.s32 %s69, 1
    %s71 = scalar_select %p68, %s69, %s70
    %p74 = pneg %p68
    %p75 = scmp.eq.s32.totalorder %s10, 4
    %p76 = por %p74, %p75
    %p77 = scmp.ne.s32.totalorder %s69, %s72
    %p78 = scmp.eq.s32.totalorder %s10, 0
    %p79 = por %p77, %p78
    %p80 = scmp.ne.s32.totalorder %s69, %s72
    %p81 = scmp.eq.s32.totalorder %s15, 4
    %p82 = por %p80, %p81
    %p83 = scmp.ne.s32.totalorder %s72, %s73
    %p84 = scmp.eq.s32.totalorder %s15, 0
    %p85 = por %p83, %p84
    %p86 = scmp.ne.s32.totalorder %s72, %s73
    %p87 = scmp.eq.s32.totalorder %s16, 4
    %p88 = por %p86, %p87
    %p90 = scmp.ne.s32.totalorder %s73, %s89
    %p91 = scmp.eq.s32.totalorder %s16, 0
    %p92 = por %p90, %p91
    %s93 = ssub.s32 %s17, %s36
    %s94 = ssub.s32 %s19, %s28
    %s95 = sor.u32 %s93, %s94
    %p96 = scmp.eq.s32.totalorder %s95, 0
    %s98 = sadd.s32 %s97, 1
    %s99 = scalar_select %p96, %s97, %s98
    %p102 = pneg %p96
    %p103 = scmp.eq.s32.totalorder %s10, 4
    %p104 = por %p102, %p103
    %p105 = scmp.ne.s32.totalorder %s97, %s100
    %p106 = scmp.eq.s32.totalorder %s10, 0
    %p107 = por %p105, %p106
    %p108 = scmp.ne.s32.totalorder %s97, %s100
    %p109 = scmp.eq.s32.totalorder %s15, 4
    %p110 = por %p108, %p109
    %p111 = scmp.ne.s32.totalorder %s100, %s101
    %p112 = scmp.eq.s32.totalorder %s15, 0
    %p113 = por %p111, %p112
    %p114 = scmp.ne.s32.totalorder %s100, %s101
    %p115 = scmp.eq.s32.totalorder %s16, 4
    %p116 = por %p114, %p115
    %p118 = scmp.ne.s32.totalorder %s101, %s117
    %p119 = scmp.eq.s32.totalorder %s16, 0
    %p120 = por %p118, %p119
    %s121 = ssub.s32 %s17, %s36
    %s122 = ssub.s32 %s19, %s28
    %s123 = sor.u32 %s121, %s122
    %p124 = scmp.eq.s32.totalorder %s123, 0
    %s126 = sadd.s32 %s125, 1
    %s127 = scalar_select %p124, %s125, %s126
    %p130 = pneg %p124
    %p131 = scmp.eq.s32.totalorder %s10, 4
    %p132 = por %p130, %p131
    %p133 = scmp.ne.s32.totalorder %s125, %s128
    %p134 = scmp.eq.s32.totalorder %s10, 0
    %p135 = por %p133, %p134
    %p136 = scmp.ne.s32.totalorder %s125, %s128
    %p137 = scmp.eq.s32.totalorder %s15, 4
    %p138 = por %p136, %p137
    %p139 = scmp.ne.s32.totalorder %s128, %s129
    %p140 = scmp.eq.s32.totalorder %s15, 0
    %p141 = por %p139, %p140
    %p142 = scmp.ne.s32.totalorder %s128, %s129
    %p143 = scmp.eq.s32.totalorder %s16, 4
    %p144 = por %p142, %p143
    %p146 = scmp.ne.s32.totalorder %s129, %s145
    %p147 = scmp.eq.s32.totalorder %s16, 0
    %p148 = por %p146, %p147
    %s149 = ssub.s32 %s17, %s36
    %s150 = ssub.s32 %s18, %s32
    %s151 = sor.u32 %s149, %s150
    %p152 = scmp.eq.s32.totalorder %s151, 0
    %s154 = sadd.s32 %s153, 1
    %s155 = scalar_select %p152, %s153, %s154
    %p158 = pneg %p152
    %p159 = scmp.eq.s32.totalorder %s10, 4
    %p160 = por %p158, %p159
    %p161 = scmp.ne.s32.totalorder %s153, %s156
    %p162 = scmp.eq.s32.totalorder %s10, 0
    %p163 = por %p161, %p162
    %p164 = scmp.ne.s32.totalorder %s153, %s156
    %p165 = scmp.eq.s32.totalorder %s15, 4
    %p166 = por %p164, %p165
    %p167 = scmp.ne.s32.totalorder %s156, %s157
    %p168 = scmp.eq.s32.totalorder %s15, 0
    %p169 = por %p167, %p168
    %p170 = scmp.ne.s32.totalorder %s156, %s157
    %p171 = scmp.eq.s32.totalorder %s16, 4
    %p172 = por %p170, %p171
    %p174 = scmp.ne.s32.totalorder %s157, %s173
    %p175 = scmp.eq.s32.totalorder %s16, 0
    %p176 = por %p174, %p175
    %p177 = scmp.le.s32.totalorder 1, %s10
    %p178 = scmp.lt.s32.totalorder %s10, 6
    %p179 = pnand %p177, %p178
    %p180 = pneg %p179
    // Predicated region
    $region9: #{ant_evaluate.1} parent=5 // pred_check
      _
    $region10: #{ant_evaluate.1} parent=5 // pred_check_branch
      %182 = sbr.rel (%p179) target = $region12
    $region11: #{ant_evaluate.1} parent=5 // pred_region
      %s183 = ssub.s32 %s10, 1
    $region12: #{ant_evaluate.1} parent=5 // pred_fallthru
      _
    %p184 = scmp.lt.s32.totalorder %s10, 5
    // Predicated region
    $region13: #{ant_evaluate.1} parent=5 // pred_check
      %p185 = pneg %p184
    $region14: #{ant_evaluate.1} parent=5 // pred_check_branch
      %187 = sbr.rel (%p185) target = $region16
    $region15: #{ant_evaluate.1} parent=5 // pred_region
      // Predicated region
      $region17: #{ant_evaluate.1} parent=15 // pred_check
        %p188 = pneg %p51
      $region18: #{ant_evaluate.1} parent=15 // pred_check_branch
        %190 = sbr.rel (%p188) target = $region20
      $region19: #{ant_evaluate.1} parent=15 // pred_region
        %p191 = scmp.lt.s32.totalorder %s17, 4
        %s192 = scalar_select %p191, %s17, 4
        %p193 = scmp.lt.s32.totalorder %s18, 0
        %s194 = scalar_select %p193, %s18, 0
        %s195 = sadd.s32 %s194, %s192
        %s196 = smul.addr %s195, 8
        %s197 = scalar_lea.vmem %s0, %s196
      $region20: #{ant_evaluate.1} parent=15 // pred_fallthru
        _
      // Predicated region
      $region21: #{ant_evaluate.1} parent=15 // pred_check
        %p198 = pneg %p79
      $region22: #{ant_evaluate.1} parent=15 // pred_check_branch
        %200 = sbr.rel (%p198) target = $region24
      $region23: #{ant_evaluate.1} parent=15 // pred_region
        %p201 = scmp.lt.s32.totalorder %s17, 4
        %s202 = scalar_select %p201, %s17, 4
        %p203 = scmp.lt.s32.totalorder %s18, 0
        %s204 = scalar_select %p203, %s18, 0
        %s205 = sadd.s32 %s204, %s202
        %s206 = smul.addr %s205, 8
        %s207 = scalar_lea.vmem %s1, %s206
      $region24: #{ant_evaluate.1} parent=15 // pred_fallthru
        _
      // Predicated region
      $region25: #{ant_evaluate.1} parent=15 // pred_check
        %p208 = pneg %p107
      $region26: #{ant_evaluate.1} parent=15 // pred_check_branch
        %210 = sbr.rel (%p208) target = $region28
      $region27: #{ant_evaluate.1} parent=15 // pred_region
        %p211 = scmp.lt.s32.totalorder %s17, 4
        %s212 = scalar_select %p211, %s17, 4
        %p213 = scmp.lt.s32.totalorder %s19, 0
        %s214 = scalar_select %p213, %s19, 0
        %s215 = sadd.s32 %s214, %s212
        %s216 = smul.addr %s215, 8
        %s217 = scalar_lea.vmem %s2, %s216
      $region28: #{ant_evaluate.1} parent=15 // pred_fallthru
        _
      // Predicated region
      $region29: #{ant_evaluate.1} parent=15 // pred_check
        %p218 = pneg %p135
      $region30: #{ant_evaluate.1} parent=15 // pred_check_branch
        %220 = sbr.rel (%p218) target = $region32
      $region31: #{ant_evaluate.1} parent=15 // pred_region
        %p221 = scmp.lt.s32.totalorder %s17, 4
        %s222 = scalar_select %p221, %s17, 4
        %p223 = scmp.lt.s32.totalorder %s19, 0
        %s224 = scalar_select %p223, %s19, 0
        %s225 = sadd.s32 %s224, %s222
        %s226 = smul.addr %s225, 8
        %s227 = scalar_lea.vmem %s3, %s226
      $region32: #{ant_evaluate.1} parent=15 // pred_fallthru
        _
    $region16: #{ant_evaluate.1} parent=5 // pred_fallthru
      _
    %p228 = scmp.le.s32.totalorder 1, %s10
    %p229 = scmp.lt.s32.totalorder %s10, 6
    %p230 = pnand %p228, %p229
    %p231 = pneg %p230
    // Predicated region
    $region33: #{ant_evaluate.1} parent=5 // pred_check
      _
    $region34: #{ant_evaluate.1} parent=5 // pred_check_branch
      %233 = sbr.rel (%p230) target = $region36
    $region35: #{ant_evaluate.1} parent=5 // pred_region
      %s234 = ssub.s32 %s10, 1
      %p235 = scmp.lt.s32.totalorder %s20, 4
      %s236 = scalar_select %p235, %s20, 4
      %p237 = scmp.lt.s32.totalorder %s21, 0
      %s238 = scalar_select %p237, %s21, 0
      %s239 = sadd.s32 %s238, %s236
      %s240 = smul.addr %s239, 8
      %s241 = scalar_lea.vmem %s0, %s240
      %p242 = pneg %p57
      %p243 = pneg %p54
      %p244 = scmp.lt.s32.totalorder %s20, 4
      %s245 = scalar_select %p244, %s20, 4
      %p246 = scmp.lt.s32.totalorder %s21, 0
      %s247 = scalar_select %p246, %s21, 0
      %s248 = sadd.s32 %s247, %s245
      %s249 = smul.addr %s248, 8
      %s250 = scalar_lea.vmem %s1, %s249
      %p251 = pneg %p85
      %p252 = pneg %p82
      %p253 = scmp.lt.s32.totalorder %s20, 4
      %s254 = scalar_select %p253, %s20, 4
      %p255 = scmp.lt.s32.totalorder %s22, 0
      %s256 = scalar_select %p255, %s22, 0
      %s257 = sadd.s32 %s256, %s254
      %s258 = smul.addr %s257, 8
      %s259 = scalar_lea.vmem %s2, %s258
      %p260 = pneg %p113
      %p261 = pneg %p110
      %p262 = scmp.lt.s32.totalorder %s20, 4
      %s263 = scalar_select %p262, %s20, 4
      %p264 = scmp.lt.s32.totalorder %s22, 0
      %s265 = scalar_select %p264, %s22, 0
      %s266 = sadd.s32 %s265, %s263
      %s267 = smul.addr %s266, 8
      %s268 = scalar_lea.vmem %s3, %s267
      %p269 = pneg %p141
      %p270 = pneg %p138
      %p271 = pneg %p169
      %p272 = pneg %p166
      %p273 = scmp.lt.s32.totalorder %s20, 4
      %s274 = scalar_select %p273, %s20, 4
      %p275 = scmp.lt.s32.totalorder %s21, 0
      %s276 = scalar_select %p275, %s21, 0
      %s277 = sadd.s32 %s276, %s274
      %s278 = smul.addr %s277, 8
      %s279 = scalar_lea.vmem %s4, %s278
      %p280 = scmp.lt.s32.totalorder %s20, 4
      %s281 = scalar_select %p280, %s20, 4
      %p282 = scmp.lt.s32.totalorder %s21, 0
      %s283 = scalar_select %p282, %s21, 0
      %s284 = sadd.s32 %s283, %s281
      %s285 = smul.addr %s284, 8
      %s286 = scalar_lea.vmem %s0, %s285
      %p287 = scmp.lt.s32.totalorder %s20, 4
      %s288 = scalar_select %p287, %s20, 4
      %p289 = scmp.lt.s32.totalorder %s21, 0
      %s290 = scalar_select %p289, %s21, 0
      %s291 = sadd.s32 %s290, %s288
      %s292 = smul.addr %s291, 8
      %s293 = scalar_lea.vmem %s1, %s292
      %p294 = scmp.lt.s32.totalorder %s20, 4
      %s295 = scalar_select %p294, %s20, 4
      %p296 = scmp.lt.s32.totalorder %s22, 0
      %s297 = scalar_select %p296, %s22, 0
      %s298 = sadd.s32 %s297, %s295
      %s299 = smul.addr %s298, 8
      %s300 = scalar_lea.vmem %s2, %s299
      %p301 = scmp.lt.s32.totalorder %s20, 4
      %s302 = scalar_select %p301, %s20, 4
      %p303 = scmp.lt.s32.totalorder %s22, 0
      %s304 = scalar_select %p303, %s22, 0
      %s305 = sadd.s32 %s304, %s302
      %s306 = smul.addr %s305, 8
      %s307 = scalar_lea.vmem %s3, %s306
      %p308 = scmp.lt.s32.totalorder %s20, 4
      %s309 = scalar_select %p308, %s20, 4
      %p310 = scmp.lt.s32.totalorder %s21, 0
      %s311 = scalar_select %p310, %s21, 0
      %s312 = sadd.s32 %s311, %s309
      %s313 = smul.addr %s312, 8
      %s314 = scalar_lea.vmem %s4, %s313
      %p315 = scmp.eq.s32.totalorder %s22, 0
      // Predicated region
      $region37: #{ant_evaluate.1} parent=35 // pred_check
        %p316 = pneg %p315
      $region38: #{ant_evaluate.1} parent=35 // pred_check_branch
        %318 = sbr.rel (%p316) target = $region40
      $region39: #{ant_evaluate.1} parent=35 // pred_region
        %319 = vst [vmem:[#allocation2] sm:$0xff] 0.0
        %320 = vst [vmem:[#allocation3] sm:$0xff] 0.0
      $region40: #{ant_evaluate.1} parent=35 // pred_fallthru
        _
      %v321 = vld [vmem:[%s286] sm:$0xff]
      %v323 = vcombine.high %v321, %v321
      %v325 = vunpack.c.l.s4 1966171168
      %v326 = vunpack.c.0.s8 %v325
      %v327 = vlaneseq
      %v328 = vshrl.u32 %v327, 7
      %v329 = vsub.s32 %v326, %v328
      %v330 = vrot.slane %v321, %v329
      %v332 = vunpack.c.l.s4 1966171168
      %v333 = vunpack.c.0.s8 %v332
      %v334 = vlaneseq
      %v335 = vshrl.u32 %v334, 7
      %v336 = vsub.s32 %v333, %v335
      %v337 = vrot.slane %v323, %v336
      %v338 = vcombine.high %v330, %v330
      %v339 = vcombine.high %v337, %v337
      %v341 = vunpack.c.l.s4 1966171168
      %v342 = vunpack.c.0.s8 %v341
      %v343 = vlaneseq
      %v344 = vshrl.u32 %v343, 7
      %v345 = vsub.s32 %v342, %v344
      %v346 = vrot.slane %v330, %v345
      %v348 = vunpack.c.l.s4 1966171168
      %v349 = vunpack.c.0.s8 %v348
      %v350 = vlaneseq
      %v351 = vshrl.u32 %v350, 7
      %v352 = vsub.s32 %v349, %v351
      %v353 = vrot.slane %v337, %v352
      %v355 = vunpack.c.l.s4 1966171168
      %v356 = vunpack.c.0.s8 %v355
      %v357 = vlaneseq
      %v358 = vshrl.u32 %v357, 7
      %v359 = vsub.s32 %v356, %v358
      %v360 = vrot.slane %v338, %v359
      %v362 = vunpack.c.l.s4 1966171168
      %v363 = vunpack.c.0.s8 %v362
      %v364 = vlaneseq
      %v365 = vshrl.u32 %v364, 7
      %v366 = vsub.s32 %v363, %v365
      %v367 = vrot.slane %v339, %v366
      %v368 = vcombine.high %v346, %v346
      %v369 = vcombine.high %v353, %v353
      %v370 = vcombine.high %v360, %v360
      %v371 = vcombine.high %v367, %v367
      %v372 = vld [vmem:[%s300] sm:$0xff]
      %v373 = vld [vmem:[%s307] sm:$0xff]
      %vm374 = vcmp.gt.f32.partialorder %v373, 0.5
      %v375 = vsel %vm374, %v372, -3e+38
      %v376 = vlaneseq
      %v377 = vshrl.u32 %v376, 7
      %v378 = vsub.s32 0, %v377
      %v379 = vrot.slane %v372, %v378
      %381 = vbcast.lane.b32.xlu0 %v379, 256
      %v382 = vpop.permute.xlu0 %381
      %s384 = sor.u32 256, 8
      %385 = vbcast.lane.b32.xlu0 %v379, %s384
      %v386 = vpop.permute.xlu0 %385
      %s388 = sor.u32 256, 16
      %389 = vbcast.lane.b32.xlu0 %v379, %s388
      %v390 = vpop.permute.xlu0 %389
      %s392 = sor.u32 256, 24
      %393 = vbcast.lane.b32.xlu0 %v379, %s392
      %v394 = vpop.permute.xlu0 %393
      %s396 = sor.u32 256, 32
      %397 = vbcast.lane.b32.xlu0 %v379, %s396
      %v398 = vpop.permute.xlu0 %397
      %s400 = sor.u32 256, 40
      %401 = vbcast.lane.b32.xlu0 %v379, %s400
      %v402 = vpop.permute.xlu0 %401
      %s404 = sor.u32 256, 48
      %405 = vbcast.lane.b32.xlu0 %v379, %s404
      %v406 = vpop.permute.xlu0 %405
      %s408 = sor.u32 256, 56
      %409 = vbcast.lane.b32.xlu0 %v379, %s408
      %v410 = vpop.permute.xlu0 %409
      %s412 = sor.u32 256, 64
      %413 = vbcast.lane.b32.xlu0 %v379, %s412
      %v414 = vpop.permute.xlu0 %413
      %s416 = sor.u32 256, 72
      %417 = vbcast.lane.b32.xlu0 %v379, %s416
      %v418 = vpop.permute.xlu0 %417
      %s420 = sor.u32 256, 80
      %421 = vbcast.lane.b32.xlu0 %v379, %s420
      %v422 = vpop.permute.xlu0 %421
      %s424 = sor.u32 256, 88
      %425 = vbcast.lane.b32.xlu0 %v379, %s424
      %v426 = vpop.permute.xlu0 %425
      %s428 = sor.u32 256, 96
      %429 = vbcast.lane.b32.xlu0 %v379, %s428
      %v430 = vpop.permute.xlu0 %429
      %s432 = sor.u32 256, 104
      %433 = vbcast.lane.b32.xlu0 %v379, %s432
      %v434 = vpop.permute.xlu0 %433
      %s436 = sor.u32 256, 112
      %437 = vbcast.lane.b32.xlu0 %v379, %s436
      %v438 = vpop.permute.xlu0 %437
      %s440 = sor.u32 256, 120
      %441 = vbcast.lane.b32.xlu0 %v379, %s440
      %v442 = vpop.permute.xlu0 %441
      %v443 = vlaneseq
      %v444 = vshrl.u32 %v443, 7
      %v445 = vsub.s32 1, %v444
      %v446 = vrot.slane %v372, %v445
      %448 = vbcast.lane.b32.xlu0 %v446, 256
      %v449 = vpop.permute.xlu0 %448
      %s451 = sor.u32 256, 8
      %452 = vbcast.lane.b32.xlu0 %v446, %s451
      %v453 = vpop.permute.xlu0 %452
      %s455 = sor.u32 256, 16
      %456 = vbcast.lane.b32.xlu0 %v446, %s455
      %v457 = vpop.permute.xlu0 %456
      %s459 = sor.u32 256, 24
      %460 = vbcast.lane.b32.xlu0 %v446, %s459
      %v461 = vpop.permute.xlu0 %460
      %s463 = sor.u32 256, 32
      %464 = vbcast.lane.b32.xlu0 %v446, %s463
      %v465 = vpop.permute.xlu0 %464
      %s467 = sor.u32 256, 40
      %468 = vbcast.lane.b32.xlu0 %v446, %s467
      %v469 = vpop.permute.xlu0 %468
      %s471 = sor.u32 256, 48
      %472 = vbcast.lane.b32.xlu0 %v446, %s471
      %v473 = vpop.permute.xlu0 %472
      %s475 = sor.u32 256, 56
      %476 = vbcast.lane.b32.xlu0 %v446, %s475
      %v477 = vpop.permute.xlu0 %476
      %s479 = sor.u32 256, 64
      %480 = vbcast.lane.b32.xlu0 %v446, %s479
      %v481 = vpop.permute.xlu0 %480
      %s483 = sor.u32 256, 72
      %484 = vbcast.lane.b32.xlu0 %v446, %s483
      %v485 = vpop.permute.xlu0 %484
      %s487 = sor.u32 256, 80
      %488 = vbcast.lane.b32.xlu0 %v446, %s487
      %v489 = vpop.permute.xlu0 %488
      %s491 = sor.u32 256, 88
      %492 = vbcast.lane.b32.xlu0 %v446, %s491
      %v493 = vpop.permute.xlu0 %492
      %s495 = sor.u32 256, 96
      %496 = vbcast.lane.b32.xlu0 %v446, %s495
      %v497 = vpop.permute.xlu0 %496
      %s499 = sor.u32 256, 104
      %500 = vbcast.lane.b32.xlu0 %v446, %s499
      %v501 = vpop.permute.xlu0 %500
      %s503 = sor.u32 256, 112
      %504 = vbcast.lane.b32.xlu0 %v446, %s503
      %v505 = vpop.permute.xlu0 %504
      %s507 = sor.u32 256, 120
      %508 = vbcast.lane.b32.xlu0 %v446, %s507
      %v509 = vpop.permute.xlu0 %508
      %v510 = vlaneseq
      %v511 = vshrl.u32 %v510, 7
      %v512 = vsub.s32 2, %v511
      %v513 = vrot.slane %v372, %v512
      %515 = vbcast.lane.b32.xlu0 %v513, 256
      %v516 = vpop.permute.xlu0 %515
      %s518 = sor.u32 256, 8
      %519 = vbcast.lane.b32.xlu0 %v513, %s518
      %v520 = vpop.permute.xlu0 %519
      %s522 = sor.u32 256, 16
      %523 = vbcast.lane.b32.xlu0 %v513, %s522
      %v524 = vpop.permute.xlu0 %523
      %s526 = sor.u32 256, 24
      %527 = vbcast.lane.b32.xlu0 %v513, %s526
      %v528 = vpop.permute.xlu0 %527
      %s530 = sor.u32 256, 32
      %531 = vbcast.lane.b32.xlu0 %v513, %s530
      %v532 = vpop.permute.xlu0 %531
      %s534 = sor.u32 256, 40
      %535 = vbcast.lane.b32.xlu0 %v513, %s534
      %v536 = vpop.permute.xlu0 %535
      %s538 = sor.u32 256, 48
      %539 = vbcast.lane.b32.xlu0 %v513, %s538
      %v540 = vpop.permute.xlu0 %539
      %s542 = sor.u32 256, 56
      %543 = vbcast.lane.b32.xlu0 %v513, %s542
      %v544 = vpop.permute.xlu0 %543
      %s546 = sor.u32 256, 64
      %547 = vbcast.lane.b32.xlu0 %v513, %s546
      %v548 = vpop.permute.xlu0 %547
      %s550 = sor.u32 256, 72
      %551 = vbcast.lane.b32.xlu0 %v513, %s550
      %v552 = vpop.permute.xlu0 %551
      %s554 = sor.u32 256, 80
      %555 = vbcast.lane.b32.xlu0 %v513, %s554
      %v556 = vpop.permute.xlu0 %555
      %s558 = sor.u32 256, 88
      %559 = vbcast.lane.b32.xlu0 %v513, %s558
      %v560 = vpop.permute.xlu0 %559
      %s562 = sor.u32 256, 96
      %563 = vbcast.lane.b32.xlu0 %v513, %s562
      %v564 = vpop.permute.xlu0 %563
      %s566 = sor.u32 256, 104
      %567 = vbcast.lane.b32.xlu0 %v513, %s566
      %v568 = vpop.permute.xlu0 %567
      %s570 = sor.u32 256, 112
      %571 = vbcast.lane.b32.xlu0 %v513, %s570
      %v572 = vpop.permute.xlu0 %571
      %s574 = sor.u32 256, 120
      %575 = vbcast.lane.b32.xlu0 %v513, %s574
      %v576 = vpop.permute.xlu0 %575
      %v577 = vlaneseq
      %v578 = vshrl.u32 %v577, 7
      %v579 = vsub.s32 3, %v578
      %v580 = vrot.slane %v372, %v579
      %582 = vbcast.lane.b32.xlu0 %v580, 256
      %v583 = vpop.permute.xlu0 %582
      %s585 = sor.u32 256, 8
      %586 = vbcast.lane.b32.xlu0 %v580, %s585
      %v587 = vpop.permute.xlu0 %586
      %s589 = sor.u32 256, 16
      %590 = vbcast.lane.b32.xlu0 %v580, %s589
      %v591 = vpop.permute.xlu0 %590
      %s593 = sor.u32 256, 24
      %594 = vbcast.lane.b32.xlu0 %v580, %s593
      %v595 = vpop.permute.xlu0 %594
      %s597 = sor.u32 256, 32
      %598 = vbcast.lane.b32.xlu0 %v580, %s597
      %v599 = vpop.permute.xlu0 %598
      %s601 = sor.u32 256, 40
      %602 = vbcast.lane.b32.xlu0 %v580, %s601
      %v603 = vpop.permute.xlu0 %602
      %s605 = sor.u32 256, 48
      %606 = vbcast.lane.b32.xlu0 %v580, %s605
      %v607 = vpop.permute.xlu0 %606
      %s609 = sor.u32 256, 56
      %610 = vbcast.lane.b32.xlu0 %v580, %s609
      %v611 = vpop.permute.xlu0 %610
      %s613 = sor.u32 256, 64
      %614 = vbcast.lane.b32.xlu0 %v580, %s613
      %v615 = vpop.permute.xlu0 %614
      %s617 = sor.u32 256, 72
      %618 = vbcast.lane.b32.xlu0 %v580, %s617
      %v619 = vpop.permute.xlu0 %618
      %s621 = sor.u32 256, 80
      %622 = vbcast.lane.b32.xlu0 %v580, %s621
      %v623 = vpop.permute.xlu0 %622
      %s625 = sor.u32 256, 88
      %626 = vbcast.lane.b32.xlu0 %v580, %s625
      %v627 = vpop.permute.xlu0 %626
      %s629 = sor.u32 256, 96
      %630 = vbcast.lane.b32.xlu0 %v580, %s629
      %v631 = vpop.permute.xlu0 %630
      %s633 = sor.u32 256, 104
      %634 = vbcast.lane.b32.xlu0 %v580, %s633
      %v635 = vpop.permute.xlu0 %634
      %s637 = sor.u32 256, 112
      %638 = vbcast.lane.b32.xlu0 %v580, %s637
      %v639 = vpop.permute.xlu0 %638
      %s641 = sor.u32 256, 120
      %642 = vbcast.lane.b32.xlu0 %v580, %s641
      %v643 = vpop.permute.xlu0 %642
      %v644 = vlaneseq
      %v645 = vshrl.u32 %v644, 7
      %v646 = vsub.s32 4, %v645
      %v647 = vrot.slane %v372, %v646
      %649 = vbcast.lane.b32.xlu0 %v647, 256
      %v650 = vpop.permute.xlu0 %649
      %s652 = sor.u32 256, 8
      %653 = vbcast.lane.b32.xlu0 %v647, %s652
      %v654 = vpop.permute.xlu0 %653
      %s656 = sor.u32 256, 16
      %657 = vbcast.lane.b32.xlu0 %v647, %s656
      %v658 = vpop.permute.xlu0 %657
      %s660 = sor.u32 256, 24
      %661 = vbcast.lane.b32.xlu0 %v647, %s660
      %v662 = vpop.permute.xlu0 %661
      %s664 = sor.u32 256, 32
      %665 = vbcast.lane.b32.xlu0 %v647, %s664
      %v666 = vpop.permute.xlu0 %665
      %s668 = sor.u32 256, 40
      %669 = vbcast.lane.b32.xlu0 %v647, %s668
      %v670 = vpop.permute.xlu0 %669
      %s672 = sor.u32 256, 48
      %673 = vbcast.lane.b32.xlu0 %v647, %s672
      %v674 = vpop.permute.xlu0 %673
      %s676 = sor.u32 256, 56
      %677 = vbcast.lane.b32.xlu0 %v647, %s676
      %v678 = vpop.permute.xlu0 %677
      %s680 = sor.u32 256, 64
      %681 = vbcast.lane.b32.xlu0 %v647, %s680
      %v682 = vpop.permute.xlu0 %681
      %s684 = sor.u32 256, 72
      %685 = vbcast.lane.b32.xlu0 %v647, %s684
      %v686 = vpop.permute.xlu0 %685
      %s688 = sor.u32 256, 80
      %689 = vbcast.lane.b32.xlu0 %v647, %s688
      %v690 = vpop.permute.xlu0 %689
      %s692 = sor.u32 256, 88
      %693 = vbcast.lane.b32.xlu0 %v647, %s692
      %v694 = vpop.permute.xlu0 %693
      %s696 = sor.u32 256, 96
      %697 = vbcast.lane.b32.xlu0 %v647, %s696
      %v698 = vpop.permute.xlu0 %697
      %s700 = sor.u32 256, 104
      %701 = vbcast.lane.b32.xlu0 %v647, %s700
      %v702 = vpop.permute.xlu0 %701
      %s704 = sor.u32 256, 112
      %705 = vbcast.lane.b32.xlu0 %v647, %s704
      %v706 = vpop.permute.xlu0 %705
      %s708 = sor.u32 256, 120
      %709 = vbcast.lane.b32.xlu0 %v647, %s708
      %v710 = vpop.permute.xlu0 %709
      %v711 = vlaneseq
      %v712 = vshrl.u32 %v711, 7
      %v713 = vsub.s32 5, %v712
      %v714 = vrot.slane %v372, %v713
      %716 = vbcast.lane.b32.xlu0 %v714, 256
      %v717 = vpop.permute.xlu0 %716
      %s719 = sor.u32 256, 8
      %720 = vbcast.lane.b32.xlu0 %v714, %s719
      %v721 = vpop.permute.xlu0 %720
      %s723 = sor.u32 256, 16
      %724 = vbcast.lane.b32.xlu0 %v714, %s723
      %v725 = vpop.permute.xlu0 %724
      %s727 = sor.u32 256, 24
      %728 = vbcast.lane.b32.xlu0 %v714, %s727
      %v729 = vpop.permute.xlu0 %728
      %s731 = sor.u32 256, 32
      %732 = vbcast.lane.b32.xlu0 %v714, %s731
      %v733 = vpop.permute.xlu0 %732
      %s735 = sor.u32 256, 40
      %736 = vbcast.lane.b32.xlu0 %v714, %s735
      %v737 = vpop.permute.xlu0 %736
      %s739 = sor.u32 256, 48
      %740 = vbcast.lane.b32.xlu0 %v714, %s739
      %v741 = vpop.permute.xlu0 %740
      %s743 = sor.u32 256, 56
      %744 = vbcast.lane.b32.xlu0 %v714, %s743
      %v745 = vpop.permute.xlu0 %744
      %s747 = sor.u32 256, 64
      %748 = vbcast.lane.b32.xlu0 %v714, %s747
      %v749 = vpop.permute.xlu0 %748
      %s751 = sor.u32 256, 72
      %752 = vbcast.lane.b32.xlu0 %v714, %s751
      %v753 = vpop.permute.xlu0 %752
      %s755 = sor.u32 256, 80
      %756 = vbcast.lane.b32.xlu0 %v714, %s755
      %v757 = vpop.permute.xlu0 %756
      %s759 = sor.u32 256, 88
      %760 = vbcast.lane.b32.xlu0 %v714, %s759
      %v761 = vpop.permute.xlu0 %760
      %s763 = sor.u32 256, 96
      %764 = vbcast.lane.b32.xlu0 %v714, %s763
      %v765 = vpop.permute.xlu0 %764
      %s767 = sor.u32 256, 104
      %768 = vbcast.lane.b32.xlu0 %v714, %s767
      %v769 = vpop.permute.xlu0 %768
      %s771 = sor.u32 256, 112
      %772 = vbcast.lane.b32.xlu0 %v714, %s771
      %v773 = vpop.permute.xlu0 %772
      %s775 = sor.u32 256, 120
      %776 = vbcast.lane.b32.xlu0 %v714, %s775
      %v777 = vpop.permute.xlu0 %776
      %v778 = vlaneseq
      %v779 = vshrl.u32 %v778, 7
      %v780 = vsub.s32 6, %v779
      %v781 = vrot.slane %v372, %v780
      %783 = vbcast.lane.b32.xlu0 %v781, 256
      %v784 = vpop.permute.xlu0 %783
      %s786 = sor.u32 256, 8
      %787 = vbcast.lane.b32.xlu0 %v781, %s786
      %v788 = vpop.permute.xlu0 %787
      %s790 = sor.u32 256, 16
      %791 = vbcast.lane.b32.xlu0 %v781, %s790
      %v792 = vpop.permute.xlu0 %791
      %s794 = sor.u32 256, 24
      %795 = vbcast.lane.b32.xlu0 %v781, %s794
      %v796 = vpop.permute.xlu0 %795
      %s798 = sor.u32 256, 32
      %799 = vbcast.lane.b32.xlu0 %v781, %s798
      %v800 = vpop.permute.xlu0 %799
      %s802 = sor.u32 256, 40
      %803 = vbcast.lane.b32.xlu0 %v781, %s802
      %v804 = vpop.permute.xlu0 %803
      %s806 = sor.u32 256, 48
      %807 = vbcast.lane.b32.xlu0 %v781, %s806
      %v808 = vpop.permute.xlu0 %807
      %s810 = sor.u32 256, 56
      %811 = vbcast.lane.b32.xlu0 %v781, %s810
      %v812 = vpop.permute.xlu0 %811
      %s814 = sor.u32 256, 64
      %815 = vbcast.lane.b32.xlu0 %v781, %s814
      %v816 = vpop.permute.xlu0 %815
      %s818 = sor.u32 256, 72
      %819 = vbcast.lane.b32.xlu0 %v781, %s818
      %v820 = vpop.permute.xlu0 %819
      %s822 = sor.u32 256, 80
      %823 = vbcast.lane.b32.xlu0 %v781, %s822
      %v824 = vpop.permute.xlu0 %823
      %s826 = sor.u32 256, 88
      %827 = vbcast.lane.b32.xlu0 %v781, %s826
      %v828 = vpop.permute.xlu0 %827
      %s830 = sor.u32 256, 96
      %831 = vbcast.lane.b32.xlu0 %v781, %s830
      %v832 = vpop.permute.xlu0 %831
      %s834 = sor.u32 256, 104
      %835 = vbcast.lane.b32.xlu0 %v781, %s834
      %v836 = vpop.permute.xlu0 %835
      %s838 = sor.u32 256, 112
      %839 = vbcast.lane.b32.xlu0 %v781, %s838
      %v840 = vpop.permute.xlu0 %839
      %s842 = sor.u32 256, 120
      %843 = vbcast.lane.b32.xlu0 %v781, %s842
      %v844 = vpop.permute.xlu0 %843
      %v845 = vlaneseq
      %v846 = vshrl.u32 %v845, 7
      %v847 = vsub.s32 7, %v846
      %v848 = vrot.slane %v372, %v847
      %850 = vbcast.lane.b32.xlu0 %v848, 256
      %v851 = vpop.permute.xlu0 %850
      %s853 = sor.u32 256, 8
      %854 = vbcast.lane.b32.xlu0 %v848, %s853
      %v855 = vpop.permute.xlu0 %854
      %s857 = sor.u32 256, 16
      %858 = vbcast.lane.b32.xlu0 %v848, %s857
      %v859 = vpop.permute.xlu0 %858
      %s861 = sor.u32 256, 24
      %862 = vbcast.lane.b32.xlu0 %v848, %s861
      %v863 = vpop.permute.xlu0 %862
      %s865 = sor.u32 256, 32
      %866 = vbcast.lane.b32.xlu0 %v848, %s865
      %v867 = vpop.permute.xlu0 %866
      %s869 = sor.u32 256, 40
      %870 = vbcast.lane.b32.xlu0 %v848, %s869
      %v871 = vpop.permute.xlu0 %870
      %s873 = sor.u32 256, 48
      %874 = vbcast.lane.b32.xlu0 %v848, %s873
      %v875 = vpop.permute.xlu0 %874
      %s877 = sor.u32 256, 56
      %878 = vbcast.lane.b32.xlu0 %v848, %s877
      %v879 = vpop.permute.xlu0 %878
      %s881 = sor.u32 256, 64
      %882 = vbcast.lane.b32.xlu0 %v848, %s881
      %v883 = vpop.permute.xlu0 %882
      %s885 = sor.u32 256, 72
      %886 = vbcast.lane.b32.xlu0 %v848, %s885
      %v887 = vpop.permute.xlu0 %886
      %s889 = sor.u32 256, 80
      %890 = vbcast.lane.b32.xlu0 %v848, %s889
      %v891 = vpop.permute.xlu0 %890
      %s893 = sor.u32 256, 88
      %894 = vbcast.lane.b32.xlu0 %v848, %s893
      %v895 = vpop.permute.xlu0 %894
      %s897 = sor.u32 256, 96
      %898 = vbcast.lane.b32.xlu0 %v848, %s897
      %v899 = vpop.permute.xlu0 %898
      %s901 = sor.u32 256, 104
      %902 = vbcast.lane.b32.xlu0 %v848, %s901
      %v903 = vpop.permute.xlu0 %902
      %s905 = sor.u32 256, 112
      %906 = vbcast.lane.b32.xlu0 %v848, %s905
      %v907 = vpop.permute.xlu0 %906
      %s909 = sor.u32 256, 120
      %910 = vbcast.lane.b32.xlu0 %v848, %s909
      %v911 = vpop.permute.xlu0 %910
      %v912 = vlaneseq
      %v913 = vshrl.u32 %v912, 7
      %v914 = vsub.s32 0, %v913
      %v915 = vrot.slane %v375, %v914
      %917 = vbcast.lane.b32.xlu0 %v915, 256
      %v918 = vpop.permute.xlu0 %917
      %s920 = sor.u32 256, 8
      %921 = vbcast.lane.b32.xlu0 %v915, %s920
      %v922 = vpop.permute.xlu0 %921
      %s924 = sor.u32 256, 16
      %925 = vbcast.lane.b32.xlu0 %v915, %s924
      %v926 = vpop.permute.xlu0 %925
      %s928 = sor.u32 256, 24
      %929 = vbcast.lane.b32.xlu0 %v915, %s928
      %v930 = vpop.permute.xlu0 %929
      %s932 = sor.u32 256, 32
      %933 = vbcast.lane.b32.xlu0 %v915, %s932
      %v934 = vpop.permute.xlu0 %933
      %s936 = sor.u32 256, 40
      %937 = vbcast.lane.b32.xlu0 %v915, %s936
      %v938 = vpop.permute.xlu0 %937
      %s940 = sor.u32 256, 48
      %941 = vbcast.lane.b32.xlu0 %v915, %s940
      %v942 = vpop.permute.xlu0 %941
      %s944 = sor.u32 256, 56
      %945 = vbcast.lane.b32.xlu0 %v915, %s944
      %v946 = vpop.permute.xlu0 %945
      %s948 = sor.u32 256, 64
      %949 = vbcast.lane.b32.xlu0 %v915, %s948
      %v950 = vpop.permute.xlu0 %949
      %s952 = sor.u32 256, 72
      %953 = vbcast.lane.b32.xlu0 %v915, %s952
      %v954 = vpop.permute.xlu0 %953
      %s956 = sor.u32 256, 80
      %957 = vbcast.lane.b32.xlu0 %v915, %s956
      %v958 = vpop.permute.xlu0 %957
      %s960 = sor.u32 256, 88
      %961 = vbcast.lane.b32.xlu0 %v915, %s960
      %v962 = vpop.permute.xlu0 %961
      %s964 = sor.u32 256, 96
      %965 = vbcast.lane.b32.xlu0 %v915, %s964
      %v966 = vpop.permute.xlu0 %965
      %s968 = sor.u32 256, 104
      %969 = vbcast.lane.b32.xlu0 %v915, %s968
      %v970 = vpop.permute.xlu0 %969
      %s972 = sor.u32 256, 112
      %973 = vbcast.lane.b32.xlu0 %v915, %s972
      %v974 = vpop.permute.xlu0 %973
      %s976 = sor.u32 256, 120
      %977 = vbcast.lane.b32.xlu0 %v915, %s976
      %v978 = vpop.permute.xlu0 %977
      %v979 = vlaneseq
      %v980 = vshrl.u32 %v979, 7
      %v981 = vsub.s32 1, %v980
      %v982 = vrot.slane %v375, %v981
      %984 = vbcast.lane.b32.xlu0 %v982, 256
      %v985 = vpop.permute.xlu0 %984
      %s987 = sor.u32 256, 8
      %988 = vbcast.lane.b32.xlu0 %v982, %s987
      %v989 = vpop.permute.xlu0 %988
      %s991 = sor.u32 256, 16
      %992 = vbcast.lane.b32.xlu0 %v982, %s991
      %v993 = vpop.permute.xlu0 %992
      %s995 = sor.u32 256, 24
      %996 = vbcast.lane.b32.xlu0 %v982, %s995
      %v997 = vpop.permute.xlu0 %996
      %s999 = sor.u32 256, 32
      %1000 = vbcast.lane.b32.xlu0 %v982, %s999
      %v1001 = vpop.permute.xlu0 %1000
      %s1003 = sor.u32 256, 40
      %1004 = vbcast.lane.b32.xlu0 %v982, %s1003
      %v1005 = vpop.permute.xlu0 %1004
      %s1007 = sor.u32 256, 48
      %1008 = vbcast.lane.b32.xlu0 %v982, %s1007
      %v1009 = vpop.permute.xlu0 %1008
      %s1011 = sor.u32 256, 56
      %1012 = vbcast.lane.b32.xlu0 %v982, %s1011
      %v1013 = vpop.permute.xlu0 %1012
      %s1015 = sor.u32 256, 64
      %1016 = vbcast.lane.b32.xlu0 %v982, %s1015
      %v1017 = vpop.permute.xlu0 %1016
      %s1019 = sor.u32 256, 72
      %1020 = vbcast.lane.b32.xlu0 %v982, %s1019
      %v1021 = vpop.permute.xlu0 %1020
      %s1023 = sor.u32 256, 80
      %1024 = vbcast.lane.b32.xlu0 %v982, %s1023
      %v1025 = vpop.permute.xlu0 %1024
      %s1027 = sor.u32 256, 88
      %1028 = vbcast.lane.b32.xlu0 %v982, %s1027
      %v1029 = vpop.permute.xlu0 %1028
      %s1031 = sor.u32 256, 96
      %1032 = vbcast.lane.b32.xlu0 %v982, %s1031
      %v1033 = vpop.permute.xlu0 %1032
      %s1035 = sor.u32 256, 104
      %1036 = vbcast.lane.b32.xlu0 %v982, %s1035
      %v1037 = vpop.permute.xlu0 %1036
      %s1039 = sor.u32 256, 112
      %1040 = vbcast.lane.b32.xlu0 %v982, %s1039
      %v1041 = vpop.permute.xlu0 %1040
      %s1043 = sor.u32 256, 120
      %1044 = vbcast.lane.b32.xlu0 %v982, %s1043
      %v1045 = vpop.permute.xlu0 %1044
      %v1046 = vlaneseq
      %v1047 = vshrl.u32 %v1046, 7
      %v1048 = vsub.s32 2, %v1047
      %v1049 = vrot.slane %v375, %v1048
      %1051 = vbcast.lane.b32.xlu0 %v1049, 256
      %v1052 = vpop.permute.xlu0 %1051
      %s1054 = sor.u32 256, 8
      %1055 = vbcast.lane.b32.xlu0 %v1049, %s1054
      %v1056 = vpop.permute.xlu0 %1055
      %s1058 = sor.u32 256, 16
      %1059 = vbcast.lane.b32.xlu0 %v1049, %s1058
      %v1060 = vpop.permute.xlu0 %1059
      %s1062 = sor.u32 256, 24
      %1063 = vbcast.lane.b32.xlu0 %v1049, %s1062
      %v1064 = vpop.permute.xlu0 %1063
      %s1066 = sor.u32 256, 32
      %1067 = vbcast.lane.b32.xlu0 %v1049, %s1066
      %v1068 = vpop.permute.xlu0 %1067
      %s1070 = sor.u32 256, 40
      %1071 = vbcast.lane.b32.xlu0 %v1049, %s1070
      %v1072 = vpop.permute.xlu0 %1071
      %s1074 = sor.u32 256, 48
      %1075 = vbcast.lane.b32.xlu0 %v1049, %s1074
      %v1076 = vpop.permute.xlu0 %1075
      %s1078 = sor.u32 256, 56
      %1079 = vbcast.lane.b32.xlu0 %v1049, %s1078
      %v1080 = vpop.permute.xlu0 %1079
      %s1082 = sor.u32 256, 64
      %1083 = vbcast.lane.b32.xlu0 %v1049, %s1082
      %v1084 = vpop.permute.xlu0 %1083
      %s1086 = sor.u32 256, 72
      %1087 = vbcast.lane.b32.xlu0 %v1049, %s1086
      %v1088 = vpop.permute.xlu0 %1087
      %s1090 = sor.u32 256, 80
      %1091 = vbcast.lane.b32.xlu0 %v1049, %s1090
      %v1092 = vpop.permute.xlu0 %1091
      %s1094 = sor.u32 256, 88
      %1095 = vbcast.lane.b32.xlu0 %v1049, %s1094
      %v1096 = vpop.permute.xlu0 %1095
      %s1098 = sor.u32 256, 96
      %1099 = vbcast.lane.b32.xlu0 %v1049, %s1098
      %v1100 = vpop.permute.xlu0 %1099
      %s1102 = sor.u32 256, 104
      %1103 = vbcast.lane.b32.xlu0 %v1049, %s1102
      %v1104 = vpop.permute.xlu0 %1103
      %s1106 = sor.u32 256, 112
      %1107 = vbcast.lane.b32.xlu0 %v1049, %s1106
      %v1108 = vpop.permute.xlu0 %1107
      %s1110 = sor.u32 256, 120
      %1111 = vbcast.lane.b32.xlu0 %v1049, %s1110
      %v1112 = vpop.permute.xlu0 %1111
      %v1113 = vlaneseq
      %v1114 = vshrl.u32 %v1113, 7
      %v1115 = vsub.s32 3, %v1114
      %v1116 = vrot.slane %v375, %v1115
      %1118 = vbcast.lane.b32.xlu0 %v1116, 256
      %v1119 = vpop.permute.xlu0 %1118
      %s1121 = sor.u32 256, 8
      %1122 = vbcast.lane.b32.xlu0 %v1116, %s1121
      %v1123 = vpop.permute.xlu0 %1122
      %s1125 = sor.u32 256, 16
      %1126 = vbcast.lane.b32.xlu0 %v1116, %s1125
      %v1127 = vpop.permute.xlu0 %1126
      %s1129 = sor.u32 256, 24
      %1130 = vbcast.lane.b32.xlu0 %v1116, %s1129
      %v1131 = vpop.permute.xlu0 %1130
      %s1133 = sor.u32 256, 32
      %1134 = vbcast.lane.b32.xlu0 %v1116, %s1133
      %v1135 = vpop.permute.xlu0 %1134
      %s1137 = sor.u32 256, 40
      %1138 = vbcast.lane.b32.xlu0 %v1116, %s1137
      %v1139 = vpop.permute.xlu0 %1138
      %s1141 = sor.u32 256, 48
      %1142 = vbcast.lane.b32.xlu0 %v1116, %s1141
      %v1143 = vpop.permute.xlu0 %1142
      %s1145 = sor.u32 256, 56
      %1146 = vbcast.lane.b32.xlu0 %v1116, %s1145
      %v1147 = vpop.permute.xlu0 %1146
      %s1149 = sor.u32 256, 64
      %1150 = vbcast.lane.b32.xlu0 %v1116, %s1149
      %v1151 = vpop.permute.xlu0 %1150
      %s1153 = sor.u32 256, 72
      %1154 = vbcast.lane.b32.xlu0 %v1116, %s1153
      %v1155 = vpop.permute.xlu0 %1154
      %s1157 = sor.u32 256, 80
      %1158 = vbcast.lane.b32.xlu0 %v1116, %s1157
      %v1159 = vpop.permute.xlu0 %1158
      %s1161 = sor.u32 256, 88
      %1162 = vbcast.lane.b32.xlu0 %v1116, %s1161
      %v1163 = vpop.permute.xlu0 %1162
      %s1165 = sor.u32 256, 96
      %1166 = vbcast.lane.b32.xlu0 %v1116, %s1165
      %v1167 = vpop.permute.xlu0 %1166
      %s1169 = sor.u32 256, 104
      %1170 = vbcast.lane.b32.xlu0 %v1116, %s1169
      %v1171 = vpop.permute.xlu0 %1170
      %s1173 = sor.u32 256, 112
      %1174 = vbcast.lane.b32.xlu0 %v1116, %s1173
      %v1175 = vpop.permute.xlu0 %1174
      %s1177 = sor.u32 256, 120
      %1178 = vbcast.lane.b32.xlu0 %v1116, %s1177
      %v1179 = vpop.permute.xlu0 %1178
      %v1180 = vlaneseq
      %v1181 = vshrl.u32 %v1180, 7
      %v1182 = vsub.s32 4, %v1181
      %v1183 = vrot.slane %v375, %v1182
      %1185 = vbcast.lane.b32.xlu0 %v1183, 256
      %v1186 = vpop.permute.xlu0 %1185
      %s1188 = sor.u32 256, 8
      %1189 = vbcast.lane.b32.xlu0 %v1183, %s1188
      %v1190 = vpop.permute.xlu0 %1189
      %s1192 = sor.u32 256, 16
      %1193 = vbcast.lane.b32.xlu0 %v1183, %s1192
      %v1194 = vpop.permute.xlu0 %1193
      %s1196 = sor.u32 256, 24
      %1197 = vbcast.lane.b32.xlu0 %v1183, %s1196
      %v1198 = vpop.permute.xlu0 %1197
      %s1200 = sor.u32 256, 32
      %1201 = vbcast.lane.b32.xlu0 %v1183, %s1200
      %v1202 = vpop.permute.xlu0 %1201
      %s1204 = sor.u32 256, 40
      %1205 = vbcast.lane.b32.xlu0 %v1183, %s1204
      %v1206 = vpop.permute.xlu0 %1205
      %s1208 = sor.u32 256, 48
      %1209 = vbcast.lane.b32.xlu0 %v1183, %s1208
      %v1210 = vpop.permute.xlu0 %1209
      %s1212 = sor.u32 256, 56
      %1213 = vbcast.lane.b32.xlu0 %v1183, %s1212
      %v1214 = vpop.permute.xlu0 %1213
      %s1216 = sor.u32 256, 64
      %1217 = vbcast.lane.b32.xlu0 %v1183, %s1216
      %v1218 = vpop.permute.xlu0 %1217
      %s1220 = sor.u32 256, 72
      %1221 = vbcast.lane.b32.xlu0 %v1183, %s1220
      %v1222 = vpop.permute.xlu0 %1221
      %s1224 = sor.u32 256, 80
      %1225 = vbcast.lane.b32.xlu0 %v1183, %s1224
      %v1226 = vpop.permute.xlu0 %1225
      %s1228 = sor.u32 256, 88
      %1229 = vbcast.lane.b32.xlu0 %v1183, %s1228
      %v1230 = vpop.permute.xlu0 %1229
      %s1232 = sor.u32 256, 96
      %1233 = vbcast.lane.b32.xlu0 %v1183, %s1232
      %v1234 = vpop.permute.xlu0 %1233
      %s1236 = sor.u32 256, 104
      %1237 = vbcast.lane.b32.xlu0 %v1183, %s1236
      %v1238 = vpop.permute.xlu0 %1237
      %s1240 = sor.u32 256, 112
      %1241 = vbcast.lane.b32.xlu0 %v1183, %s1240
      %v1242 = vpop.permute.xlu0 %1241
      %s1244 = sor.u32 256, 120
      %1245 = vbcast.lane.b32.xlu0 %v1183, %s1244
      %v1246 = vpop.permute.xlu0 %1245
      %v1247 = vlaneseq
      %v1248 = vshrl.u32 %v1247, 7
      %v1249 = vsub.s32 5, %v1248
      %v1250 = vrot.slane %v375, %v1249
      %1252 = vbcast.lane.b32.xlu0 %v1250, 256
      %v1253 = vpop.permute.xlu0 %1252
      %s1255 = sor.u32 256, 8
      %1256 = vbcast.lane.b32.xlu0 %v1250, %s1255
      %v1257 = vpop.permute.xlu0 %1256
      %s1259 = sor.u32 256, 16
      %1260 = vbcast.lane.b32.xlu0 %v1250, %s1259
      %v1261 = vpop.permute.xlu0 %1260
      %s1263 = sor.u32 256, 24
      %1264 = vbcast.lane.b32.xlu0 %v1250, %s1263
      %v1265 = vpop.permute.xlu0 %1264
      %s1267 = sor.u32 256, 32
      %1268 = vbcast.lane.b32.xlu0 %v1250, %s1267
      %v1269 = vpop.permute.xlu0 %1268
      %s1271 = sor.u32 256, 40
      %1272 = vbcast.lane.b32.xlu0 %v1250, %s1271
      %v1273 = vpop.permute.xlu0 %1272
      %s1275 = sor.u32 256, 48
      %1276 = vbcast.lane.b32.xlu0 %v1250, %s1275
      %v1277 = vpop.permute.xlu0 %1276
      %s1279 = sor.u32 256, 56
      %1280 = vbcast.lane.b32.xlu0 %v1250, %s1279
      %v1281 = vpop.permute.xlu0 %1280
      %s1283 = sor.u32 256, 64
      %1284 = vbcast.lane.b32.xlu0 %v1250, %s1283
      %v1285 = vpop.permute.xlu0 %1284
      %s1287 = sor.u32 256, 72
      %1288 = vbcast.lane.b32.xlu0 %v1250, %s1287
      %v1289 = vpop.permute.xlu0 %1288
      %s1291 = sor.u32 256, 80
      %1292 = vbcast.lane.b32.xlu0 %v1250, %s1291
      %v1293 = vpop.permute.xlu0 %1292
      %s1295 = sor.u32 256, 88
      %1296 = vbcast.lane.b32.xlu0 %v1250, %s1295
      %v1297 = vpop.permute.xlu0 %1296
      %s1299 = sor.u32 256, 96
      %1300 = vbcast.lane.b32.xlu0 %v1250, %s1299
      %v1301 = vpop.permute.xlu0 %1300
      %s1303 = sor.u32 256, 104
      %1304 = vbcast.lane.b32.xlu0 %v1250, %s1303
      %v1305 = vpop.permute.xlu0 %1304
      %s1307 = sor.u32 256, 112
      %1308 = vbcast.lane.b32.xlu0 %v1250, %s1307
      %v1309 = vpop.permute.xlu0 %1308
      %s1311 = sor.u32 256, 120
      %1312 = vbcast.lane.b32.xlu0 %v1250, %s1311
      %v1313 = vpop.permute.xlu0 %1312
      %v1314 = vlaneseq
      %v1315 = vshrl.u32 %v1314, 7
      %v1316 = vsub.s32 6, %v1315
      %v1317 = vrot.slane %v375, %v1316
      %1319 = vbcast.lane.b32.xlu0 %v1317, 256
      %v1320 = vpop.permute.xlu0 %1319
      %s1322 = sor.u32 256, 8
      %1323 = vbcast.lane.b32.xlu0 %v1317, %s1322
      %v1324 = vpop.permute.xlu0 %1323
      %s1326 = sor.u32 256, 16
      %1327 = vbcast.lane.b32.xlu0 %v1317, %s1326
      %v1328 = vpop.permute.xlu0 %1327
      %s1330 = sor.u32 256, 24
      %1331 = vbcast.lane.b32.xlu0 %v1317, %s1330
      %v1332 = vpop.permute.xlu0 %1331
      %s1334 = sor.u32 256, 32
      %1335 = vbcast.lane.b32.xlu0 %v1317, %s1334
      %v1336 = vpop.permute.xlu0 %1335
      %s1338 = sor.u32 256, 40
      %1339 = vbcast.lane.b32.xlu0 %v1317, %s1338
      %v1340 = vpop.permute.xlu0 %1339
      %s1342 = sor.u32 256, 48
      %1343 = vbcast.lane.b32.xlu0 %v1317, %s1342
      %v1344 = vpop.permute.xlu0 %1343
      %s1346 = sor.u32 256, 56
      %1347 = vbcast.lane.b32.xlu0 %v1317, %s1346
      %v1348 = vpop.permute.xlu0 %1347
      %s1350 = sor.u32 256, 64
      %1351 = vbcast.lane.b32.xlu0 %v1317, %s1350
      %v1352 = vpop.permute.xlu0 %1351
      %s1354 = sor.u32 256, 72
      %1355 = vbcast.lane.b32.xlu0 %v1317, %s1354
      %v1356 = vpop.permute.xlu0 %1355
      %s1358 = sor.u32 256, 80
      %1359 = vbcast.lane.b32.xlu0 %v1317, %s1358
      %v1360 = vpop.permute.xlu0 %1359
      %s1362 = sor.u32 256, 88
      %1363 = vbcast.lane.b32.xlu0 %v1317, %s1362
      %v1364 = vpop.permute.xlu0 %1363
      %s1366 = sor.u32 256, 96
      %1367 = vbcast.lane.b32.xlu0 %v1317, %s1366
      %v1368 = vpop.permute.xlu0 %1367
      %s1370 = sor.u32 256, 104
      %1371 = vbcast.lane.b32.xlu0 %v1317, %s1370
      %v1372 = vpop.permute.xlu0 %1371
      %s1374 = sor.u32 256, 112
      %1375 = vbcast.lane.b32.xlu0 %v1317, %s1374
      %v1376 = vpop.permute.xlu0 %1375
      %s1378 = sor.u32 256, 120
      %1379 = vbcast.lane.b32.xlu0 %v1317, %s1378
      %v1380 = vpop.permute.xlu0 %1379
      %v1381 = vlaneseq
      %v1382 = vshrl.u32 %v1381, 7
      %v1383 = vsub.s32 7, %v1382
      %v1384 = vrot.slane %v375, %v1383
      %1386 = vbcast.lane.b32.xlu0 %v1384, 256
      %v1387 = vpop.permute.xlu0 %1386
      %s1389 = sor.u32 256, 8
      %1390 = vbcast.lane.b32.xlu0 %v1384, %s1389
      %v1391 = vpop.permute.xlu0 %1390
      %s1393 = sor.u32 256, 16
      %1394 = vbcast.lane.b32.xlu0 %v1384, %s1393
      %v1395 = vpop.permute.xlu0 %1394
      %s1397 = sor.u32 256, 24
      %1398 = vbcast.lane.b32.xlu0 %v1384, %s1397
      %v1399 = vpop.permute.xlu0 %1398
      %s1401 = sor.u32 256, 32
      %1402 = vbcast.lane.b32.xlu0 %v1384, %s1401
      %v1403 = vpop.permute.xlu0 %1402
      %s1405 = sor.u32 256, 40
      %1406 = vbcast.lane.b32.xlu0 %v1384, %s1405
      %v1407 = vpop.permute.xlu0 %1406
      %s1409 = sor.u32 256, 48
      %1410 = vbcast.lane.b32.xlu0 %v1384, %s1409
      %v1411 = vpop.permute.xlu0 %1410
      %s1413 = sor.u32 256, 56
      %1414 = vbcast.lane.b32.xlu0 %v1384, %s1413
      %v1415 = vpop.permute.xlu0 %1414
      %s1417 = sor.u32 256, 64
      %1418 = vbcast.lane.b32.xlu0 %v1384, %s1417
      %v1419 = vpop.permute.xlu0 %1418
      %s1421 = sor.u32 256, 72
      %1422 = vbcast.lane.b32.xlu0 %v1384, %s1421
      %v1423 = vpop.permute.xlu0 %1422
      %s1425 = sor.u32 256, 80
      %1426 = vbcast.lane.b32.xlu0 %v1384, %s1425
      %v1427 = vpop.permute.xlu0 %1426
      %s1429 = sor.u32 256, 88
      %1430 = vbcast.lane.b32.xlu0 %v1384, %s1429
      %v1431 = vpop.permute.xlu0 %1430
      %s1433 = sor.u32 256, 96
      %1434 = vbcast.lane.b32.xlu0 %v1384, %s1433
      %v1435 = vpop.permute.xlu0 %1434
      %s1437 = sor.u32 256, 104
      %1438 = vbcast.lane.b32.xlu0 %v1384, %s1437
      %v1439 = vpop.permute.xlu0 %1438
      %s1441 = sor.u32 256, 112
      %1442 = vbcast.lane.b32.xlu0 %v1384, %s1441
      %v1443 = vpop.permute.xlu0 %1442
      %s1445 = sor.u32 256, 120
      %1446 = vbcast.lane.b32.xlu0 %v1384, %s1445
      %v1447 = vpop.permute.xlu0 %1446
      %v1448 = vlaneseq
      %v1449 = vshrl.u32 %v1448, 7
      %v1450 = vsub.s32 0, %v1449
      %v1451 = vrot.slane %v346, %v1450
      %v1452 = vlaneseq
      %v1453 = vshrl.u32 %v1452, 7
      %v1454 = vsub.s32 0, %v1453
      %v1455 = vrot.slane %v360, %v1454
      %v1456 = vlaneseq
      %v1457 = vshrl.u32 %v1456, 7
      %v1458 = vsub.s32 0, %v1457
      %v1459 = vrot.slane %v368, %v1458
      %v1460 = vlaneseq
      %v1461 = vshrl.u32 %v1460, 7
      %v1462 = vsub.s32 0, %v1461
      %v1463 = vrot.slane %v370, %v1462
      %v1464 = vlaneseq
      %v1465 = vshrl.u32 %v1464, 7
      %v1466 = vsub.s32 0, %v1465
      %v1467 = vrot.slane %v353, %v1466
      %v1468 = vlaneseq
      %v1469 = vshrl.u32 %v1468, 7
      %v1470 = vsub.s32 0, %v1469
      %v1471 = vrot.slane %v367, %v1470
      %v1472 = vlaneseq
      %v1473 = vshrl.u32 %v1472, 7
      %v1474 = vsub.s32 0, %v1473
      %v1475 = vrot.slane %v369, %v1474
      %v1476 = vlaneseq
      %v1477 = vshrl.u32 %v1476, 7
      %v1478 = vsub.s32 0, %v1477
      %v1479 = vrot.slane %v371, %v1478
      %vm1488 = vcmp.ge.f32.partialorder %v382, %v1451
      %vm1489 = vcmp.ge.f32.partialorder %v386, %v1451
      %vm1490 = vcmp.ge.f32.partialorder %v390, %v1451
      %vm1491 = vcmp.ge.f32.partialorder %v394, %v1451
      %vm1492 = vcmp.ge.f32.partialorder %v398, %v1451
      %vm1493 = vcmp.ge.f32.partialorder %v402, %v1451
      %vm1494 = vcmp.ge.f32.partialorder %v406, %v1451
      %vm1495 = vcmp.ge.f32.partialorder %v410, %v1451
      %vm1496 = vcmp.ge.f32.partialorder %v414, %v1451
      %vm1497 = vcmp.ge.f32.partialorder %v418, %v1451
      %vm1498 = vcmp.ge.f32.partialorder %v422, %v1451
      %vm1499 = vcmp.ge.f32.partialorder %v426, %v1451
      %vm1500 = vcmp.ge.f32.partialorder %v430, %v1451
      %vm1501 = vcmp.ge.f32.partialorder %v434, %v1451
      %vm1502 = vcmp.ge.f32.partialorder %v438, %v1451
      %vm1503 = vcmp.ge.f32.partialorder %v442, %v1451
      %vm1504 = vcmp.ge.f32.partialorder %v449, %v1455
      %vm1505 = vcmp.ge.f32.partialorder %v453, %v1455
      %vm1506 = vcmp.ge.f32.partialorder %v457, %v1455
      %vm1507 = vcmp.ge.f32.partialorder %v461, %v1455
      %vm1508 = vcmp.ge.f32.partialorder %v465, %v1455
      %vm1509 = vcmp.ge.f32.partialorder %v469, %v1455
      %vm1510 = vcmp.ge.f32.partialorder %v473, %v1455
      %vm1511 = vcmp.ge.f32.partialorder %v477, %v1455
      %vm1512 = vcmp.ge.f32.partialorder %v481, %v1455
      %vm1513 = vcmp.ge.f32.partialorder %v485, %v1455
      %vm1514 = vcmp.ge.f32.partialorder %v489, %v1455
      %vm1515 = vcmp.ge.f32.partialorder %v493, %v1455
      %vm1516 = vcmp.ge.f32.partialorder %v497, %v1455
      %vm1517 = vcmp.ge.f32.partialorder %v501, %v1455
      %vm1518 = vcmp.ge.f32.partialorder %v505, %v1455
      %vm1519 = vcmp.ge.f32.partialorder %v509, %v1455
      %vm1520 = vcmp.ge.f32.partialorder %v516, %v1459
      %vm1521 = vcmp.ge.f32.partialorder %v520, %v1459
      %vm1522 = vcmp.ge.f32.partialorder %v524, %v1459
      %vm1523 = vcmp.ge.f32.partialorder %v528, %v1459
      %vm1524 = vcmp.ge.f32.partialorder %v532, %v1459
      %vm1525 = vcmp.ge.f32.partialorder %v536, %v1459
      %vm1526 = vcmp.ge.f32.partialorder %v540, %v1459
      %vm1527 = vcmp.ge.f32.partialorder %v544, %v1459
      %vm1528 = vcmp.ge.f32.partialorder %v548, %v1459
      %vm1529 = vcmp.ge.f32.partialorder %v552, %v1459
      %vm1530 = vcmp.ge.f32.partialorder %v556, %v1459
      %vm1531 = vcmp.ge.f32.partialorder %v560, %v1459
      %vm1532 = vcmp.ge.f32.partialorder %v564, %v1459
      %vm1533 = vcmp.ge.f32.partialorder %v568, %v1459
      %vm1534 = vcmp.ge.f32.partialorder %v572, %v1459
      %vm1535 = vcmp.ge.f32.partialorder %v576, %v1459
      %vm1536 = vcmp.ge.f32.partialorder %v583, %v1463
      %vm1537 = vcmp.ge.f32.partialorder %v587, %v1463
      %vm1538 = vcmp.ge.f32.partialorder %v591, %v1463
      %vm1539 = vcmp.ge.f32.partialorder %v595, %v1463
      %vm1540 = vcmp.ge.f32.partialorder %v599, %v1463
      %vm1541 = vcmp.ge.f32.partialorder %v603, %v1463
      %vm1542 = vcmp.ge.f32.partialorder %v607, %v1463
      %vm1543 = vcmp.ge.f32.partialorder %v611, %v1463
      %vm1544 = vcmp.ge.f32.partialorder %v615, %v1463
      %vm1545 = vcmp.ge.f32.partialorder %v619, %v1463
      %vm1546 = vcmp.ge.f32.partialorder %v623, %v1463
      %vm1547 = vcmp.ge.f32.partialorder %v627, %v1463
      %vm1548 = vcmp.ge.f32.partialorder %v631, %v1463
      %vm1549 = vcmp.ge.f32.partialorder %v635, %v1463
      %vm1550 = vcmp.ge.f32.partialorder %v639, %v1463
      %vm1551 = vcmp.ge.f32.partialorder %v643, %v1463
      %vm1552 = vcmp.ge.f32.partialorder %v650, %v1467
      %vm1553 = vcmp.ge.f32.partialorder %v654, %v1467
      %vm1554 = vcmp.ge.f32.partialorder %v658, %v1467
      %vm1555 = vcmp.ge.f32.partialorder %v662, %v1467
      %vm1556 = vcmp.ge.f32.partialorder %v666, %v1467
      %vm1557 = vcmp.ge.f32.partialorder %v670, %v1467
      %vm1558 = vcmp.ge.f32.partialorder %v674, %v1467
      %vm1559 = vcmp.ge.f32.partialorder %v678, %v1467
      %vm1560 = vcmp.ge.f32.partialorder %v682, %v1467
      %vm1561 = vcmp.ge.f32.partialorder %v686, %v1467
      %vm1562 = vcmp.ge.f32.partialorder %v690, %v1467
      %vm1563 = vcmp.ge.f32.partialorder %v694, %v1467
      %vm1564 = vcmp.ge.f32.partialorder %v698, %v1467
      %vm1565 = vcmp.ge.f32.partialorder %v702, %v1467
      %vm1566 = vcmp.ge.f32.partialorder %v706, %v1467
      %vm1567 = vcmp.ge.f32.partialorder %v710, %v1467
      %vm1568 = vcmp.ge.f32.partialorder %v717, %v1471
      %vm1569 = vcmp.ge.f32.partialorder %v721, %v1471
      %vm1570 = vcmp.ge.f32.partialorder %v725, %v1471
      %vm1571 = vcmp.ge.f32.partialorder %v729, %v1471
      %vm1572 = vcmp.ge.f32.partialorder %v733, %v1471
      %vm1573 = vcmp.ge.f32.partialorder %v737, %v1471
      %vm1574 = vcmp.ge.f32.partialorder %v741, %v1471
      %vm1575 = vcmp.ge.f32.partialorder %v745, %v1471
      %vm1576 = vcmp.ge.f32.partialorder %v749, %v1471
      %vm1577 = vcmp.ge.f32.partialorder %v753, %v1471
      %vm1578 = vcmp.ge.f32.partialorder %v757, %v1471
      %vm1579 = vcmp.ge.f32.partialorder %v761, %v1471
      %vm1580 = vcmp.ge.f32.partialorder %v765, %v1471
      %vm1581 = vcmp.ge.f32.partialorder %v769, %v1471
      %vm1582 = vcmp.ge.f32.partialorder %v773, %v1471
      %vm1583 = vcmp.ge.f32.partialorder %v777, %v1471
      %vm1584 = vcmp.ge.f32.partialorder %v784, %v1475
      %vm1585 = vcmp.ge.f32.partialorder %v788, %v1475
      %vm1586 = vcmp.ge.f32.partialorder %v792, %v1475
      %vm1587 = vcmp.ge.f32.partialorder %v796, %v1475
      %vm1588 = vcmp.ge.f32.partialorder %v800, %v1475
      %vm1589 = vcmp.ge.f32.partialorder %v804, %v1475
      %vm1590 = vcmp.ge.f32.partialorder %v808, %v1475
      %vm1591 = vcmp.ge.f32.partialorder %v812, %v1475
      %vm1592 = vcmp.ge.f32.partialorder %v816, %v1475
      %vm1593 = vcmp.ge.f32.partialorder %v820, %v1475
      %vm1594 = vcmp.ge.f32.partialorder %v824, %v1475
      %vm1595 = vcmp.ge.f32.partialorder %v828, %v1475
      %vm1596 = vcmp.ge.f32.partialorder %v832, %v1475
      %vm1597 = vcmp.ge.f32.partialorder %v836, %v1475
      %vm1598 = vcmp.ge.f32.partialorder %v840, %v1475
      %vm1599 = vcmp.ge.f32.partialorder %v844, %v1475
      %vm1600 = vcmp.ge.f32.partialorder %v851, %v1479
      %vm1601 = vcmp.ge.f32.partialorder %v855, %v1479
      %vm1602 = vcmp.ge.f32.partialorder %v859, %v1479
      %vm1603 = vcmp.ge.f32.partialorder %v863, %v1479
      %vm1604 = vcmp.ge.f32.partialorder %v867, %v1479
      %vm1605 = vcmp.ge.f32.partialorder %v871, %v1479
      %vm1606 = vcmp.ge.f32.partialorder %v875, %v1479
      %vm1607 = vcmp.ge.f32.partialorder %v879, %v1479
      %vm1608 = vcmp.ge.f32.partialorder %v883, %v1479
      %vm1609 = vcmp.ge.f32.partialorder %v887, %v1479
      %vm1610 = vcmp.ge.f32.partialorder %v891, %v1479
      %vm1611 = vcmp.ge.f32.partialorder %v895, %v1479
      %vm1612 = vcmp.ge.f32.partialorder %v899, %v1479
      %vm1613 = vcmp.ge.f32.partialorder %v903, %v1479
      %vm1614 = vcmp.ge.f32.partialorder %v907, %v1479
      %vm1615 = vcmp.ge.f32.partialorder %v911, %v1479
      %v1616 = vsel %vm1488, 1, 0
      %v1617 = vsel %vm1489, 1, 0
      %v1618 = vsel %vm1490, 1, 0
      %v1619 = vsel %vm1491, 1, 0
      %v1620 = vsel %vm1492, 1, 0
      %v1621 = vsel %vm1493, 1, 0
      %v1622 = vsel %vm1494, 1, 0
      %v1623 = vsel %vm1495, 1, 0
      %v1624 = vsel %vm1496, 1, 0
      %v1625 = vsel %vm1497, 1, 0
      %v1626 = vsel %vm1498, 1, 0
      %v1627 = vsel %vm1499, 1, 0
      %v1628 = vsel %vm1500, 1, 0
      %v1629 = vsel %vm1501, 1, 0
      %v1630 = vsel %vm1502, 1, 0
      %v1631 = vsel %vm1503, 1, 0
      %v1632 = vsel %vm1504, 1, 0
      %v1633 = vsel %vm1505, 1, 0
      %v1634 = vsel %vm1506, 1, 0
      %v1635 = vsel %vm1507, 1, 0
      %v1636 = vsel %vm1508, 1, 0
      %v1637 = vsel %vm1509, 1, 0
      %v1638 = vsel %vm1510, 1, 0
      %v1639 = vsel %vm1511, 1, 0
      %v1640 = vsel %vm1512, 1, 0
      %v1641 = vsel %vm1513, 1, 0
      %v1642 = vsel %vm1514, 1, 0
      %v1643 = vsel %vm1515, 1, 0
      %v1644 = vsel %vm1516, 1, 0
      %v1645 = vsel %vm1517, 1, 0
      %v1646 = vsel %vm1518, 1, 0
      %v1647 = vsel %vm1519, 1, 0
      %v1648 = vsel %vm1520, 1, 0
      %v1649 = vsel %vm1521, 1, 0
      %v1650 = vsel %vm1522, 1, 0
      %v1651 = vsel %vm1523, 1, 0
      %v1652 = vsel %vm1524, 1, 0
      %v1653 = vsel %vm1525, 1, 0
      %v1654 = vsel %vm1526, 1, 0
      %v1655 = vsel %vm1527, 1, 0
      %v1656 = vsel %vm1528, 1, 0
      %v1657 = vsel %vm1529, 1, 0
      %v1658 = vsel %vm1530, 1, 0
      %v1659 = vsel %vm1531, 1, 0
      %v1660 = vsel %vm1532, 1, 0
      %v1661 = vsel %vm1533, 1, 0
      %v1662 = vsel %vm1534, 1, 0
      %v1663 = vsel %vm1535, 1, 0
      %v1664 = vsel %vm1536, 1, 0
      %v1665 = vsel %vm1537, 1, 0
      %v1666 = vsel %vm1538, 1, 0
      %v1667 = vsel %vm1539, 1, 0
      %v1668 = vsel %vm1540, 1, 0
      %v1669 = vsel %vm1541, 1, 0
      %v1670 = vsel %vm1542, 1, 0
      %v1671 = vsel %vm1543, 1, 0
      %v1672 = vsel %vm1544, 1, 0
      %v1673 = vsel %vm1545, 1, 0
      %v1674 = vsel %vm1546, 1, 0
      %v1675 = vsel %vm1547, 1, 0
      %v1676 = vsel %vm1548, 1, 0
      %v1677 = vsel %vm1549, 1, 0
      %v1678 = vsel %vm1550, 1, 0
      %v1679 = vsel %vm1551, 1, 0
      %v1680 = vsel %vm1552, 1, 0
      %v1681 = vsel %vm1553, 1, 0
      %v1682 = vsel %vm1554, 1, 0
      %v1683 = vsel %vm1555, 1, 0
      %v1684 = vsel %vm1556, 1, 0
      %v1685 = vsel %vm1557, 1, 0
      %v1686 = vsel %vm1558, 1, 0
      %v1687 = vsel %vm1559, 1, 0
      %v1688 = vsel %vm1560, 1, 0
      %v1689 = vsel %vm1561, 1, 0
      %v1690 = vsel %vm1562, 1, 0
      %v1691 = vsel %vm1563, 1, 0
      %v1692 = vsel %vm1564, 1, 0
      %v1693 = vsel %vm1565, 1, 0
      %v1694 = vsel %vm1566, 1, 0
      %v1695 = vsel %vm1567, 1, 0
      %v1696 = vsel %vm1568, 1, 0
      %v1697 = vsel %vm1569, 1, 0
      %v1698 = vsel %vm1570, 1, 0
      %v1699 = vsel %vm1571, 1, 0
      %v1700 = vsel %vm1572, 1, 0
      %v1701 = vsel %vm1573, 1, 0
      %v1702 = vsel %vm1574, 1, 0
      %v1703 = vsel %vm1575, 1, 0
      %v1704 = vsel %vm1576, 1, 0
      %v1705 = vsel %vm1577, 1, 0
      %v1706 = vsel %vm1578, 1, 0
      %v1707 = vsel %vm1579, 1, 0
      %v1708 = vsel %vm1580, 1, 0
      %v1709 = vsel %vm1581, 1, 0
      %v1710 = vsel %vm1582, 1, 0
      %v1711 = vsel %vm1583, 1, 0
      %v1712 = vsel %vm1584, 1, 0
      %v1713 = vsel %vm1585, 1, 0
      %v1714 = vsel %vm1586, 1, 0
      %v1715 = vsel %vm1587, 1, 0
      %v1716 = vsel %vm1588, 1, 0
      %v1717 = vsel %vm1589, 1, 0
      %v1718 = vsel %vm1590, 1, 0
      %v1719 = vsel %vm1591, 1, 0
      %v1720 = vsel %vm1592, 1, 0
      %v1721 = vsel %vm1593, 1, 0
      %v1722 = vsel %vm1594, 1, 0
      %v1723 = vsel %vm1595, 1, 0
      %v1724 = vsel %vm1596, 1, 0
      %v1725 = vsel %vm1597, 1, 0
      %v1726 = vsel %vm1598, 1, 0
      %v1727 = vsel %vm1599, 1, 0
      %v1728 = vsel %vm1600, 1, 0
      %v1729 = vsel %vm1601, 1, 0
      %v1730 = vsel %vm1602, 1, 0
      %v1731 = vsel %vm1603, 1, 0
      %v1732 = vsel %vm1604, 1, 0
      %v1733 = vsel %vm1605, 1, 0
      %v1734 = vsel %vm1606, 1, 0
      %v1735 = vsel %vm1607, 1, 0
      %v1736 = vsel %vm1608, 1, 0
      %v1737 = vsel %vm1609, 1, 0
      %v1738 = vsel %vm1610, 1, 0
      %v1739 = vsel %vm1611, 1, 0
      %v1740 = vsel %vm1612, 1, 0
      %v1741 = vsel %vm1613, 1, 0
      %v1742 = vsel %vm1614, 1, 0
      %v1743 = vsel %vm1615, 1, 0
      %v1744 = vcvt.s32.f32 %v1616
      %v1745 = vcvt.s32.f32 %v1617
      %v1746 = vcvt.s32.f32 %v1618
      %v1747 = vcvt.s32.f32 %v1619
      %v1748 = vcvt.s32.f32 %v1620
      %v1749 = vcvt.s32.f32 %v1621
      %v1750 = vcvt.s32.f32 %v1622
      %v1751 = vcvt.s32.f32 %v1623
      %v1752 = vcvt.s32.f32 %v1624
      %v1753 = vcvt.s32.f32 %v1625
      %v1754 = vcvt.s32.f32 %v1626
      %v1755 = vcvt.s32.f32 %v1627
      %v1756 = vcvt.s32.f32 %v1628
      %v1757 = vcvt.s32.f32 %v1629
      %v1758 = vcvt.s32.f32 %v1630
      %v1759 = vcvt.s32.f32 %v1631
      %v1760 = vcvt.s32.f32 %v1632
      %v1761 = vcvt.s32.f32 %v1633
      %v1762 = vcvt.s32.f32 %v1634
      %v1763 = vcvt.s32.f32 %v1635
      %v1764 = vcvt.s32.f32 %v1636
      %v1765 = vcvt.s32.f32 %v1637
      %v1766 = vcvt.s32.f32 %v1638
      %v1767 = vcvt.s32.f32 %v1639
      %v1768 = vcvt.s32.f32 %v1640
      %v1769 = vcvt.s32.f32 %v1641
      %v1770 = vcvt.s32.f32 %v1642
      %v1771 = vcvt.s32.f32 %v1643
      %v1772 = vcvt.s32.f32 %v1644
      %v1773 = vcvt.s32.f32 %v1645
      %v1774 = vcvt.s32.f32 %v1646
      %v1775 = vcvt.s32.f32 %v1647
      %v1776 = vcvt.s32.f32 %v1648
      %v1777 = vcvt.s32.f32 %v1649
      %v1778 = vcvt.s32.f32 %v1650
      %v1779 = vcvt.s32.f32 %v1651
      %v1780 = vcvt.s32.f32 %v1652
      %v1781 = vcvt.s32.f32 %v1653
      %v1782 = vcvt.s32.f32 %v1654
      %v1783 = vcvt.s32.f32 %v1655
      %v1784 = vcvt.s32.f32 %v1656
      %v1785 = vcvt.s32.f32 %v1657
      %v1786 = vcvt.s32.f32 %v1658
      %v1787 = vcvt.s32.f32 %v1659
      %v1788 = vcvt.s32.f32 %v1660
      %v1789 = vcvt.s32.f32 %v1661
      %v1790 = vcvt.s32.f32 %v1662
      %v1791 = vcvt.s32.f32 %v1663
      %v1792 = vcvt.s32.f32 %v1664
      %v1793 = vcvt.s32.f32 %v1665
      %v1794 = vcvt.s32.f32 %v1666
      %v1795 = vcvt.s32.f32 %v1667
      %v1796 = vcvt.s32.f32 %v1668
      %v1797 = vcvt.s32.f32 %v1669
      %v1798 = vcvt.s32.f32 %v1670
      %v1799 = vcvt.s32.f32 %v1671
      %v1800 = vcvt.s32.f32 %v1672
      %v1801 = vcvt.s32.f32 %v1673
      %v1802 = vcvt.s32.f32 %v1674
      %v1803 = vcvt.s32.f32 %v1675
      %v1804 = vcvt.s32.f32 %v1676
      %v1805 = vcvt.s32.f32 %v1677
      %v1806 = vcvt.s32.f32 %v1678
      %v1807 = vcvt.s32.f32 %v1679
      %v1808 = vcvt.s32.f32 %v1680
      %v1809 = vcvt.s32.f32 %v1681
      %v1810 = vcvt.s32.f32 %v1682
      %v1811 = vcvt.s32.f32 %v1683
      %v1812 = vcvt.s32.f32 %v1684
      %v1813 = vcvt.s32.f32 %v1685
      %v1814 = vcvt.s32.f32 %v1686
      %v1815 = vcvt.s32.f32 %v1687
      %v1816 = vcvt.s32.f32 %v1688
      %v1817 = vcvt.s32.f32 %v1689
      %v1818 = vcvt.s32.f32 %v1690
      %v1819 = vcvt.s32.f32 %v1691
      %v1820 = vcvt.s32.f32 %v1692
      %v1821 = vcvt.s32.f32 %v1693
      %v1822 = vcvt.s32.f32 %v1694
      %v1823 = vcvt.s32.f32 %v1695
      %v1824 = vcvt.s32.f32 %v1696
      %v1825 = vcvt.s32.f32 %v1697
      %v1826 = vcvt.s32.f32 %v1698
      %v1827 = vcvt.s32.f32 %v1699
      %v1828 = vcvt.s32.f32 %v1700
      %v1829 = vcvt.s32.f32 %v1701
      %v1830 = vcvt.s32.f32 %v1702
      %v1831 = vcvt.s32.f32 %v1703
      %v1832 = vcvt.s32.f32 %v1704
      %v1833 = vcvt.s32.f32 %v1705
      %v1834 = vcvt.s32.f32 %v1706
      %v1835 = vcvt.s32.f32 %v1707
      %v1836 = vcvt.s32.f32 %v1708
      %v1837 = vcvt.s32.f32 %v1709
      %v1838 = vcvt.s32.f32 %v1710
      %v1839 = vcvt.s32.f32 %v1711
      %v1840 = vcvt.s32.f32 %v1712
      %v1841 = vcvt.s32.f32 %v1713
      %v1842 = vcvt.s32.f32 %v1714
      %v1843 = vcvt.s32.f32 %v1715
      %v1844 = vcvt.s32.f32 %v1716
      %v1845 = vcvt.s32.f32 %v1717
      %v1846 = vcvt.s32.f32 %v1718
      %v1847 = vcvt.s32.f32 %v1719
      %v1848 = vcvt.s32.f32 %v1720
      %v1849 = vcvt.s32.f32 %v1721
      %v1850 = vcvt.s32.f32 %v1722
      %v1851 = vcvt.s32.f32 %v1723
      %v1852 = vcvt.s32.f32 %v1724
      %v1853 = vcvt.s32.f32 %v1725
      %v1854 = vcvt.s32.f32 %v1726
      %v1855 = vcvt.s32.f32 %v1727
      %v1856 = vcvt.s32.f32 %v1728
      %v1857 = vcvt.s32.f32 %v1729
      %v1858 = vcvt.s32.f32 %v1730
      %v1859 = vcvt.s32.f32 %v1731
      %v1860 = vcvt.s32.f32 %v1732
      %v1861 = vcvt.s32.f32 %v1733
      %v1862 = vcvt.s32.f32 %v1734
      %v1863 = vcvt.s32.f32 %v1735
      %v1864 = vcvt.s32.f32 %v1736
      %v1865 = vcvt.s32.f32 %v1737
      %v1866 = vcvt.s32.f32 %v1738
      %v1867 = vcvt.s32.f32 %v1739
      %v1868 = vcvt.s32.f32 %v1740
      %v1869 = vcvt.s32.f32 %v1741
      %v1870 = vcvt.s32.f32 %v1742
      %v1871 = vcvt.s32.f32 %v1743
      %vm1872 = vcmp.ge.f32.partialorder %v918, %v1451
      %vm1873 = vcmp.ge.f32.partialorder %v922, %v1451
      %vm1874 = vcmp.ge.f32.partialorder %v926, %v1451
      %vm1875 = vcmp.ge.f32.partialorder %v930, %v1451
      %vm1876 = vcmp.ge.f32.partialorder %v934, %v1451
      %vm1877 = vcmp.ge.f32.partialorder %v938, %v1451
      %vm1878 = vcmp.ge.f32.partialorder %v942, %v1451
      %vm1879 = vcmp.ge.f32.partialorder %v946, %v1451
      %vm1880 = vcmp.ge.f32.partialorder %v950, %v1451
      %vm1881 = vcmp.ge.f32.partialorder %v954, %v1451
      %vm1882 = vcmp.ge.f32.partialorder %v958, %v1451
      %vm1883 = vcmp.ge.f32.partialorder %v962, %v1451
      %vm1884 = vcmp.ge.f32.partialorder %v966, %v1451
      %vm1885 = vcmp.ge.f32.partialorder %v970, %v1451
      %vm1886 = vcmp.ge.f32.partialorder %v974, %v1451
      %vm1887 = vcmp.ge.f32.partialorder %v978, %v1451
      %vm1888 = vcmp.ge.f32.partialorder %v985, %v1455
      %vm1889 = vcmp.ge.f32.partialorder %v989, %v1455
      %vm1890 = vcmp.ge.f32.partialorder %v993, %v1455
      %vm1891 = vcmp.ge.f32.partialorder %v997, %v1455
      %vm1892 = vcmp.ge.f32.partialorder %v1001, %v1455
      %vm1893 = vcmp.ge.f32.partialorder %v1005, %v1455
      %vm1894 = vcmp.ge.f32.partialorder %v1009, %v1455
      %vm1895 = vcmp.ge.f32.partialorder %v1013, %v1455
      %vm1896 = vcmp.ge.f32.partialorder %v1017, %v1455
      %vm1897 = vcmp.ge.f32.partialorder %v1021, %v1455
      %vm1898 = vcmp.ge.f32.partialorder %v1025, %v1455
      %vm1899 = vcmp.ge.f32.partialorder %v1029, %v1455
      %vm1900 = vcmp.ge.f32.partialorder %v1033, %v1455
      %vm1901 = vcmp.ge.f32.partialorder %v1037, %v1455
      %vm1902 = vcmp.ge.f32.partialorder %v1041, %v1455
      %vm1903 = vcmp.ge.f32.partialorder %v1045, %v1455
      %vm1904 = vcmp.ge.f32.partialorder %v1052, %v1459
      %vm1905 = vcmp.ge.f32.partialorder %v1056, %v1459
      %vm1906 = vcmp.ge.f32.partialorder %v1060, %v1459
      %vm1907 = vcmp.ge.f32.partialorder %v1064, %v1459
      %vm1908 = vcmp.ge.f32.partialorder %v1068, %v1459
      %vm1909 = vcmp.ge.f32.partialorder %v1072, %v1459
      %vm1910 = vcmp.ge.f32.partialorder %v1076, %v1459
      %vm1911 = vcmp.ge.f32.partialorder %v1080, %v1459
      %vm1912 = vcmp.ge.f32.partialorder %v1084, %v1459
      %vm1913 = vcmp.ge.f32.partialorder %v1088, %v1459
      %vm1914 = vcmp.ge.f32.partialorder %v1092, %v1459
      %vm1915 = vcmp.ge.f32.partialorder %v1096, %v1459
      %vm1916 = vcmp.ge.f32.partialorder %v1100, %v1459
      %vm1917 = vcmp.ge.f32.partialorder %v1104, %v1459
      %vm1918 = vcmp.ge.f32.partialorder %v1108, %v1459
      %vm1919 = vcmp.ge.f32.partialorder %v1112, %v1459
      %vm1920 = vcmp.ge.f32.partialorder %v1119, %v1463
      %vm1921 = vcmp.ge.f32.partialorder %v1123, %v1463
      %vm1922 = vcmp.ge.f32.partialorder %v1127, %v1463
      %vm1923 = vcmp.ge.f32.partialorder %v1131, %v1463
      %vm1924 = vcmp.ge.f32.partialorder %v1135, %v1463
      %vm1925 = vcmp.ge.f32.partialorder %v1139, %v1463
      %vm1926 = vcmp.ge.f32.partialorder %v1143, %v1463
      %vm1927 = vcmp.ge.f32.partialorder %v1147, %v1463
      %vm1928 = vcmp.ge.f32.partialorder %v1151, %v1463
      %vm1929 = vcmp.ge.f32.partialorder %v1155, %v1463
      %vm1930 = vcmp.ge.f32.partialorder %v1159, %v1463
      %vm1931 = vcmp.ge.f32.partialorder %v1163, %v1463
      %vm1932 = vcmp.ge.f32.partialorder %v1167, %v1463
      %vm1933 = vcmp.ge.f32.partialorder %v1171, %v1463
      %vm1934 = vcmp.ge.f32.partialorder %v1175, %v1463
      %vm1935 = vcmp.ge.f32.partialorder %v1179, %v1463
      %vm1936 = vcmp.ge.f32.partialorder %v1186, %v1467
      %vm1937 = vcmp.ge.f32.partialorder %v1190, %v1467
      %vm1938 = vcmp.ge.f32.partialorder %v1194, %v1467
      %vm1939 = vcmp.ge.f32.partialorder %v1198, %v1467
      %vm1940 = vcmp.ge.f32.partialorder %v1202, %v1467
      %vm1941 = vcmp.ge.f32.partialorder %v1206, %v1467
      %vm1942 = vcmp.ge.f32.partialorder %v1210, %v1467
      %vm1943 = vcmp.ge.f32.partialorder %v1214, %v1467
      %vm1944 = vcmp.ge.f32.partialorder %v1218, %v1467
      %vm1945 = vcmp.ge.f32.partialorder %v1222, %v1467
      %vm1946 = vcmp.ge.f32.partialorder %v1226, %v1467
      %vm1947 = vcmp.ge.f32.partialorder %v1230, %v1467
      %vm1948 = vcmp.ge.f32.partialorder %v1234, %v1467
      %vm1949 = vcmp.ge.f32.partialorder %v1238, %v1467
      %vm1950 = vcmp.ge.f32.partialorder %v1242, %v1467
      %vm1951 = vcmp.ge.f32.partialorder %v1246, %v1467
      %vm1952 = vcmp.ge.f32.partialorder %v1253, %v1471
      %vm1953 = vcmp.ge.f32.partialorder %v1257, %v1471
      %vm1954 = vcmp.ge.f32.partialorder %v1261, %v1471
      %vm1955 = vcmp.ge.f32.partialorder %v1265, %v1471
      %vm1956 = vcmp.ge.f32.partialorder %v1269, %v1471
      %vm1957 = vcmp.ge.f32.partialorder %v1273, %v1471
      %vm1958 = vcmp.ge.f32.partialorder %v1277, %v1471
      %vm1959 = vcmp.ge.f32.partialorder %v1281, %v1471
      %vm1960 = vcmp.ge.f32.partialorder %v1285, %v1471
      %vm1961 = vcmp.ge.f32.partialorder %v1289, %v1471
      %vm1962 = vcmp.ge.f32.partialorder %v1293, %v1471
      %vm1963 = vcmp.ge.f32.partialorder %v1297, %v1471
      %vm1964 = vcmp.ge.f32.partialorder %v1301, %v1471
      %vm1965 = vcmp.ge.f32.partialorder %v1305, %v1471
      %vm1966 = vcmp.ge.f32.partialorder %v1309, %v1471
      %vm1967 = vcmp.ge.f32.partialorder %v1313, %v1471
      %vm1968 = vcmp.ge.f32.partialorder %v1320, %v1475
      %vm1969 = vcmp.ge.f32.partialorder %v1324, %v1475
      %vm1970 = vcmp.ge.f32.partialorder %v1328, %v1475
      %vm1971 = vcmp.ge.f32.partialorder %v1332, %v1475
      %vm1972 = vcmp.ge.f32.partialorder %v1336, %v1475
      %vm1973 = vcmp.ge.f32.partialorder %v1340, %v1475
      %vm1974 = vcmp.ge.f32.partialorder %v1344, %v1475
      %vm1975 = vcmp.ge.f32.partialorder %v1348, %v1475
      %vm1976 = vcmp.ge.f32.partialorder %v1352, %v1475
      %vm1977 = vcmp.ge.f32.partialorder %v1356, %v1475
      %vm1978 = vcmp.ge.f32.partialorder %v1360, %v1475
      %vm1979 = vcmp.ge.f32.partialorder %v1364, %v1475
      %vm1980 = vcmp.ge.f32.partialorder %v1368, %v1475
      %vm1981 = vcmp.ge.f32.partialorder %v1372, %v1475
      %vm1982 = vcmp.ge.f32.partialorder %v1376, %v1475
      %vm1983 = vcmp.ge.f32.partialorder %v1380, %v1475
      %vm1984 = vcmp.ge.f32.partialorder %v1387, %v1479
      %vm1985 = vcmp.ge.f32.partialorder %v1391, %v1479
      %vm1986 = vcmp.ge.f32.partialorder %v1395, %v1479
      %vm1987 = vcmp.ge.f32.partialorder %v1399, %v1479
      %vm1988 = vcmp.ge.f32.partialorder %v1403, %v1479
      %vm1989 = vcmp.ge.f32.partialorder %v1407, %v1479
      %vm1990 = vcmp.ge.f32.partialorder %v1411, %v1479
      %vm1991 = vcmp.ge.f32.partialorder %v1415, %v1479
      %vm1992 = vcmp.ge.f32.partialorder %v1419, %v1479
      %vm1993 = vcmp.ge.f32.partialorder %v1423, %v1479
      %vm1994 = vcmp.ge.f32.partialorder %v1427, %v1479
      %vm1995 = vcmp.ge.f32.partialorder %v1431, %v1479
      %vm1996 = vcmp.ge.f32.partialorder %v1435, %v1479
      %vm1997 = vcmp.ge.f32.partialorder %v1439, %v1479
      %vm1998 = vcmp.ge.f32.partialorder %v1443, %v1479
      %vm1999 = vcmp.ge.f32.partialorder %v1447, %v1479
      %v2000 = vsel %vm1872, 1, 0
      %v2001 = vsel %vm1873, 1, 0
      %v2002 = vsel %vm1874, 1, 0
      %v2003 = vsel %vm1875, 1, 0
      %v2004 = vsel %vm1876, 1, 0
      %v2005 = vsel %vm1877, 1, 0
      %v2006 = vsel %vm1878, 1, 0
      %v2007 = vsel %vm1879, 1, 0
      %v2008 = vsel %vm1880, 1, 0
      %v2009 = vsel %vm1881, 1, 0
      %v2010 = vsel %vm1882, 1, 0
      %v2011 = vsel %vm1883, 1, 0
      %v2012 = vsel %vm1884, 1, 0
      %v2013 = vsel %vm1885, 1, 0
      %v2014 = vsel %vm1886, 1, 0
      %v2015 = vsel %vm1887, 1, 0
      %v2016 = vsel %vm1888, 1, 0
      %v2017 = vsel %vm1889, 1, 0
      %v2018 = vsel %vm1890, 1, 0
      %v2019 = vsel %vm1891, 1, 0
      %v2020 = vsel %vm1892, 1, 0
      %v2021 = vsel %vm1893, 1, 0
      %v2022 = vsel %vm1894, 1, 0
      %v2023 = vsel %vm1895, 1, 0
      %v2024 = vsel %vm1896, 1, 0
      %v2025 = vsel %vm1897, 1, 0
      %v2026 = vsel %vm1898, 1, 0
      %v2027 = vsel %vm1899, 1, 0
      %v2028 = vsel %vm1900, 1, 0
      %v2029 = vsel %vm1901, 1, 0
      %v2030 = vsel %vm1902, 1, 0
      %v2031 = vsel %vm1903, 1, 0
      %v2032 = vsel %vm1904, 1, 0
      %v2033 = vsel %vm1905, 1, 0
      %v2034 = vsel %vm1906, 1, 0
      %v2035 = vsel %vm1907, 1, 0
      %v2036 = vsel %vm1908, 1, 0
      %v2037 = vsel %vm1909, 1, 0
      %v2038 = vsel %vm1910, 1, 0
      %v2039 = vsel %vm1911, 1, 0
      %v2040 = vsel %vm1912, 1, 0
      %v2041 = vsel %vm1913, 1, 0
      %v2042 = vsel %vm1914, 1, 0
      %v2043 = vsel %vm1915, 1, 0
      %v2044 = vsel %vm1916, 1, 0
      %v2045 = vsel %vm1917, 1, 0
      %v2046 = vsel %vm1918, 1, 0
      %v2047 = vsel %vm1919, 1, 0
      %v2048 = vsel %vm1920, 1, 0
      %v2049 = vsel %vm1921, 1, 0
      %v2050 = vsel %vm1922, 1, 0
      %v2051 = vsel %vm1923, 1, 0
      %v2052 = vsel %vm1924, 1, 0
      %v2053 = vsel %vm1925, 1, 0
      %v2054 = vsel %vm1926, 1, 0
      %v2055 = vsel %vm1927, 1, 0
      %v2056 = vsel %vm1928, 1, 0
      %v2057 = vsel %vm1929, 1, 0
      %v2058 = vsel %vm1930, 1, 0
      %v2059 = vsel %vm1931, 1, 0
      %v2060 = vsel %vm1932, 1, 0
      %v2061 = vsel %vm1933, 1, 0
      %v2062 = vsel %vm1934, 1, 0
      %v2063 = vsel %vm1935, 1, 0
      %v2064 = vsel %vm1936, 1, 0
      %v2065 = vsel %vm1937, 1, 0
      %v2066 = vsel %vm1938, 1, 0
      %v2067 = vsel %vm1939, 1, 0
      %v2068 = vsel %vm1940, 1, 0
      %v2069 = vsel %vm1941, 1, 0
      %v2070 = vsel %vm1942, 1, 0
      %v2071 = vsel %vm1943, 1, 0
      %v2072 = vsel %vm1944, 1, 0
      %v2073 = vsel %vm1945, 1, 0
      %v2074 = vsel %vm1946, 1, 0
      %v2075 = vsel %vm1947, 1, 0
      %v2076 = vsel %vm1948, 1, 0
      %v2077 = vsel %vm1949, 1, 0
      %v2078 = vsel %vm1950, 1, 0
      %v2079 = vsel %vm1951, 1, 0
      %v2080 = vsel %vm1952, 1, 0
      %v2081 = vsel %vm1953, 1, 0
      %v2082 = vsel %vm1954, 1, 0
      %v2083 = vsel %vm1955, 1, 0
      %v2084 = vsel %vm1956, 1, 0
      %v2085 = vsel %vm1957, 1, 0
      %v2086 = vsel %vm1958, 1, 0
      %v2087 = vsel %vm1959, 1, 0
      %v2088 = vsel %vm1960, 1, 0
      %v2089 = vsel %vm1961, 1, 0
      %v2090 = vsel %vm1962, 1, 0
      %v2091 = vsel %vm1963, 1, 0
      %v2092 = vsel %vm1964, 1, 0
      %v2093 = vsel %vm1965, 1, 0
      %v2094 = vsel %vm1966, 1, 0
      %v2095 = vsel %vm1967, 1, 0
      %v2096 = vsel %vm1968, 1, 0
      %v2097 = vsel %vm1969, 1, 0
      %v2098 = vsel %vm1970, 1, 0
      %v2099 = vsel %vm1971, 1, 0
      %v2100 = vsel %vm1972, 1, 0
      %v2101 = vsel %vm1973, 1, 0
      %v2102 = vsel %vm1974, 1, 0
      %v2103 = vsel %vm1975, 1, 0
      %v2104 = vsel %vm1976, 1, 0
      %v2105 = vsel %vm1977, 1, 0
      %v2106 = vsel %vm1978, 1, 0
      %v2107 = vsel %vm1979, 1, 0
      %v2108 = vsel %vm1980, 1, 0
      %v2109 = vsel %vm1981, 1, 0
      %v2110 = vsel %vm1982, 1, 0
      %v2111 = vsel %vm1983, 1, 0
      %v2112 = vsel %vm1984, 1, 0
      %v2113 = vsel %vm1985, 1, 0
      %v2114 = vsel %vm1986, 1, 0
      %v2115 = vsel %vm1987, 1, 0
      %v2116 = vsel %vm1988, 1, 0
      %v2117 = vsel %vm1989, 1, 0
      %v2118 = vsel %vm1990, 1, 0
      %v2119 = vsel %vm1991, 1, 0
      %v2120 = vsel %vm1992, 1, 0
      %v2121 = vsel %vm1993, 1, 0
      %v2122 = vsel %vm1994, 1, 0
      %v2123 = vsel %vm1995, 1, 0
      %v2124 = vsel %vm1996, 1, 0
      %v2125 = vsel %vm1997, 1, 0
      %v2126 = vsel %vm1998, 1, 0
      %v2127 = vsel %vm1999, 1, 0
      %v2128 = vcvt.s32.f32 %v2000
      %v2129 = vcvt.s32.f32 %v2001
      %v2130 = vcvt.s32.f32 %v2002
      %v2131 = vcvt.s32.f32 %v2003
      %v2132 = vcvt.s32.f32 %v2004
      %v2133 = vcvt.s32.f32 %v2005
      %v2134 = vcvt.s32.f32 %v2006
      %v2135 = vcvt.s32.f32 %v2007
      %v2136 = vcvt.s32.f32 %v2008
      %v2137 = vcvt.s32.f32 %v2009
      %v2138 = vcvt.s32.f32 %v2010
      %v2139 = vcvt.s32.f32 %v2011
      %v2140 = vcvt.s32.f32 %v2012
      %v2141 = vcvt.s32.f32 %v2013
      %v2142 = vcvt.s32.f32 %v2014
      %v2143 = vcvt.s32.f32 %v2015
      %v2144 = vcvt.s32.f32 %v2016
      %v2145 = vcvt.s32.f32 %v2017
      %v2146 = vcvt.s32.f32 %v2018
      %v2147 = vcvt.s32.f32 %v2019
      %v2148 = vcvt.s32.f32 %v2020
      %v2149 = vcvt.s32.f32 %v2021
      %v2150 = vcvt.s32.f32 %v2022
      %v2151 = vcvt.s32.f32 %v2023
      %v2152 = vcvt.s32.f32 %v2024
      %v2153 = vcvt.s32.f32 %v2025
      %v2154 = vcvt.s32.f32 %v2026
      %v2155 = vcvt.s32.f32 %v2027
      %v2156 = vcvt.s32.f32 %v2028
      %v2157 = vcvt.s32.f32 %v2029
      %v2158 = vcvt.s32.f32 %v2030
      %v2159 = vcvt.s32.f32 %v2031
      %v2160 = vcvt.s32.f32 %v2032
      %v2161 = vcvt.s32.f32 %v2033
      %v2162 = vcvt.s32.f32 %v2034
      %v2163 = vcvt.s32.f32 %v2035
      %v2164 = vcvt.s32.f32 %v2036
      %v2165 = vcvt.s32.f32 %v2037
      %v2166 = vcvt.s32.f32 %v2038
      %v2167 = vcvt.s32.f32 %v2039
      %v2168 = vcvt.s32.f32 %v2040
      %v2169 = vcvt.s32.f32 %v2041
      %v2170 = vcvt.s32.f32 %v2042
      %v2171 = vcvt.s32.f32 %v2043
      %v2172 = vcvt.s32.f32 %v2044
      %v2173 = vcvt.s32.f32 %v2045
      %v2174 = vcvt.s32.f32 %v2046
      %v2175 = vcvt.s32.f32 %v2047
      %v2176 = vcvt.s32.f32 %v2048
      %v2177 = vcvt.s32.f32 %v2049
      %v2178 = vcvt.s32.f32 %v2050
      %v2179 = vcvt.s32.f32 %v2051
      %v2180 = vcvt.s32.f32 %v2052
      %v2181 = vcvt.s32.f32 %v2053
      %v2182 = vcvt.s32.f32 %v2054
      %v2183 = vcvt.s32.f32 %v2055
      %v2184 = vcvt.s32.f32 %v2056
      %v2185 = vcvt.s32.f32 %v2057
      %v2186 = vcvt.s32.f32 %v2058
      %v2187 = vcvt.s32.f32 %v2059
      %v2188 = vcvt.s32.f32 %v2060
      %v2189 = vcvt.s32.f32 %v2061
      %v2190 = vcvt.s32.f32 %v2062
      %v2191 = vcvt.s32.f32 %v2063
      %v2192 = vcvt.s32.f32 %v2064
      %v2193 = vcvt.s32.f32 %v2065
      %v2194 = vcvt.s32.f32 %v2066
      %v2195 = vcvt.s32.f32 %v2067
      %v2196 = vcvt.s32.f32 %v2068
      %v2197 = vcvt.s32.f32 %v2069
      %v2198 = vcvt.s32.f32 %v2070
      %v2199 = vcvt.s32.f32 %v2071
      %v2200 = vcvt.s32.f32 %v2072
      %v2201 = vcvt.s32.f32 %v2073
      %v2202 = vcvt.s32.f32 %v2074
      %v2203 = vcvt.s32.f32 %v2075
      %v2204 = vcvt.s32.f32 %v2076
      %v2205 = vcvt.s32.f32 %v2077
      %v2206 = vcvt.s32.f32 %v2078
      %v2207 = vcvt.s32.f32 %v2079
      %v2208 = vcvt.s32.f32 %v2080
      %v2209 = vcvt.s32.f32 %v2081
      %v2210 = vcvt.s32.f32 %v2082
      %v2211 = vcvt.s32.f32 %v2083
      %v2212 = vcvt.s32.f32 %v2084
      %v2213 = vcvt.s32.f32 %v2085
      %v2214 = vcvt.s32.f32 %v2086
      %v2215 = vcvt.s32.f32 %v2087
      %v2216 = vcvt.s32.f32 %v2088
      %v2217 = vcvt.s32.f32 %v2089
      %v2218 = vcvt.s32.f32 %v2090
      %v2219 = vcvt.s32.f32 %v2091
      %v2220 = vcvt.s32.f32 %v2092
      %v2221 = vcvt.s32.f32 %v2093
      %v2222 = vcvt.s32.f32 %v2094
      %v2223 = vcvt.s32.f32 %v2095
      %v2224 = vcvt.s32.f32 %v2096
      %v2225 = vcvt.s32.f32 %v2097
      %v2226 = vcvt.s32.f32 %v2098
      %v2227 = vcvt.s32.f32 %v2099
      %v2228 = vcvt.s32.f32 %v2100
      %v2229 = vcvt.s32.f32 %v2101
      %v2230 = vcvt.s32.f32 %v2102
      %v2231 = vcvt.s32.f32 %v2103
      %v2232 = vcvt.s32.f32 %v2104
      %v2233 = vcvt.s32.f32 %v2105
      %v2234 = vcvt.s32.f32 %v2106
      %v2235 = vcvt.s32.f32 %v2107
      %v2236 = vcvt.s32.f32 %v2108
      %v2237 = vcvt.s32.f32 %v2109
      %v2238 = vcvt.s32.f32 %v2110
      %v2239 = vcvt.s32.f32 %v2111
      %v2240 = vcvt.s32.f32 %v2112
      %v2241 = vcvt.s32.f32 %v2113
      %v2242 = vcvt.s32.f32 %v2114
      %v2243 = vcvt.s32.f32 %v2115
      %v2244 = vcvt.s32.f32 %v2116
      %v2245 = vcvt.s32.f32 %v2117
      %v2246 = vcvt.s32.f32 %v2118
      %v2247 = vcvt.s32.f32 %v2119
      %v2248 = vcvt.s32.f32 %v2120
      %v2249 = vcvt.s32.f32 %v2121
      %v2250 = vcvt.s32.f32 %v2122
      %v2251 = vcvt.s32.f32 %v2123
      %v2252 = vcvt.s32.f32 %v2124
      %v2253 = vcvt.s32.f32 %v2125
      %v2254 = vcvt.s32.f32 %v2126
      %v2255 = vcvt.s32.f32 %v2127
      %v2256 = vld [vmem:[#allocation3] sm:$0xff]
      %v2257 = vadd.f32 %v1744, %v1745
      %v2258 = vadd.f32 %v2257, %v1746
      %v2259 = vadd.f32 %v2258, %v1747
      %v2260 = vadd.f32 %v2259, %v1748
      %v2261 = vadd.f32 %v2260, %v1749
      %v2262 = vadd.f32 %v2261, %v1750
      %v2263 = vadd.f32 %v2262, %v1751
      %v2264 = vadd.f32 %v2263, %v1752
      %v2265 = vadd.f32 %v2264, %v1753
      %v2266 = vadd.f32 %v2265, %v1754
      %v2267 = vadd.f32 %v2266, %v1755
      %v2268 = vadd.f32 %v2267, %v1756
      %v2269 = vadd.f32 %v2268, %v1757
      %v2270 = vadd.f32 %v2269, %v1758
      %v2271 = vadd.f32 %v2270, %v1759
      %v2272 = vrot.slane %v2271, 4
      %v2273 = vadd.f32 %v2271, %v2272
      %v2274 = vrot.slane %v2273, 2
      %v2275 = vadd.f32 %v2273, %v2274
      %v2276 = vrot.slane %v2275, 1
      %v2277 = vadd.f32 %v2275, %v2276
      %v2278 = vadd.f32 %v1760, %v1761
      %v2279 = vadd.f32 %v2278, %v1762
      %v2280 = vadd.f32 %v2279, %v1763
      %v2281 = vadd.f32 %v2280, %v1764
      %v2282 = vadd.f32 %v2281, %v1765
      %v2283 = vadd.f32 %v2282, %v1766
      %v2284 = vadd.f32 %v2283, %v1767
      %v2285 = vadd.f32 %v2284, %v1768
      %v2286 = vadd.f32 %v2285, %v1769
      %v2287 = vadd.f32 %v2286, %v1770
      %v2288 = vadd.f32 %v2287, %v1771
      %v2289 = vadd.f32 %v2288, %v1772
      %v2290 = vadd.f32 %v2289, %v1773
      %v2291 = vadd.f32 %v2290, %v1774
      %v2292 = vadd.f32 %v2291, %v1775
      %v2293 = vrot.slane %v2292, 4
      %v2294 = vadd.f32 %v2292, %v2293
      %v2295 = vrot.slane %v2294, 2
      %v2296 = vadd.f32 %v2294, %v2295
      %v2297 = vrot.slane %v2296, 1
      %v2298 = vadd.f32 %v2296, %v2297
      %v2299 = vadd.f32 %v1776, %v1777
      %v2300 = vadd.f32 %v2299, %v1778
      %v2301 = vadd.f32 %v2300, %v1779
      %v2302 = vadd.f32 %v2301, %v1780
      %v2303 = vadd.f32 %v2302, %v1781
      %v2304 = vadd.f32 %v2303, %v1782
      %v2305 = vadd.f32 %v2304, %v1783
      %v2306 = vadd.f32 %v2305, %v1784
      %v2307 = vadd.f32 %v2306, %v1785
      %v2308 = vadd.f32 %v2307, %v1786
      %v2309 = vadd.f32 %v2308, %v1787
      %v2310 = vadd.f32 %v2309, %v1788
      %v2311 = vadd.f32 %v2310, %v1789
      %v2312 = vadd.f32 %v2311, %v1790
      %v2313 = vadd.f32 %v2312, %v1791
      %v2314 = vrot.slane %v2313, 4
      %v2315 = vadd.f32 %v2313, %v2314
      %v2316 = vrot.slane %v2315, 2
      %v2317 = vadd.f32 %v2315, %v2316
      %v2318 = vrot.slane %v2317, 1
      %v2319 = vadd.f32 %v2317, %v2318
      %v2320 = vadd.f32 %v1792, %v1793
      %v2321 = vadd.f32 %v2320, %v1794
      %v2322 = vadd.f32 %v2321, %v1795
      %v2323 = vadd.f32 %v2322, %v1796
      %v2324 = vadd.f32 %v2323, %v1797
      %v2325 = vadd.f32 %v2324, %v1798
      %v2326 = vadd.f32 %v2325, %v1799
      %v2327 = vadd.f32 %v2326, %v1800
      %v2328 = vadd.f32 %v2327, %v1801
      %v2329 = vadd.f32 %v2328, %v1802
      %v2330 = vadd.f32 %v2329, %v1803
      %v2331 = vadd.f32 %v2330, %v1804
      %v2332 = vadd.f32 %v2331, %v1805
      %v2333 = vadd.f32 %v2332, %v1806
      %v2334 = vadd.f32 %v2333, %v1807
      %v2335 = vrot.slane %v2334, 4
      %v2336 = vadd.f32 %v2334, %v2335
      %v2337 = vrot.slane %v2336, 2
      %v2338 = vadd.f32 %v2336, %v2337
      %v2339 = vrot.slane %v2338, 1
      %v2340 = vadd.f32 %v2338, %v2339
      %v2341 = vadd.f32 %v1808, %v1809
      %v2342 = vadd.f32 %v2341, %v1810
      %v2343 = vadd.f32 %v2342, %v1811
      %v2344 = vadd.f32 %v2343, %v1812
      %v2345 = vadd.f32 %v2344, %v1813
      %v2346 = vadd.f32 %v2345, %v1814
      %v2347 = vadd.f32 %v2346, %v1815
      %v2348 = vadd.f32 %v2347, %v1816
      %v2349 = vadd.f32 %v2348, %v1817
      %v2350 = vadd.f32 %v2349, %v1818
      %v2351 = vadd.f32 %v2350, %v1819
      %v2352 = vadd.f32 %v2351, %v1820
      %v2353 = vadd.f32 %v2352, %v1821
      %v2354 = vadd.f32 %v2353, %v1822
      %v2355 = vadd.f32 %v2354, %v1823
      %v2356 = vrot.slane %v2355, 4
      %v2357 = vadd.f32 %v2355, %v2356
      %v2358 = vrot.slane %v2357, 2
      %v2359 = vadd.f32 %v2357, %v2358
      %v2360 = vrot.slane %v2359, 1
      %v2361 = vadd.f32 %v2359, %v2360
      %v2362 = vadd.f32 %v1824, %v1825
      %v2363 = vadd.f32 %v2362, %v1826
      %v2364 = vadd.f32 %v2363, %v1827
      %v2365 = vadd.f32 %v2364, %v1828
      %v2366 = vadd.f32 %v2365, %v1829
      %v2367 = vadd.f32 %v2366, %v1830
      %v2368 = vadd.f32 %v2367, %v1831
      %v2369 = vadd.f32 %v2368, %v1832
      %v2370 = vadd.f32 %v2369, %v1833
      %v2371 = vadd.f32 %v2370, %v1834
      %v2372 = vadd.f32 %v2371, %v1835
      %v2373 = vadd.f32 %v2372, %v1836
      %v2374 = vadd.f32 %v2373, %v1837
      %v2375 = vadd.f32 %v2374, %v1838
      %v2376 = vadd.f32 %v2375, %v1839
      %v2377 = vrot.slane %v2376, 4
      %v2378 = vadd.f32 %v2376, %v2377
      %v2379 = vrot.slane %v2378, 2
      %v2380 = vadd.f32 %v2378, %v2379
      %v2381 = vrot.slane %v2380, 1
      %v2382 = vadd.f32 %v2380, %v2381
      %v2383 = vadd.f32 %v1840, %v1841
      %v2384 = vadd.f32 %v2383, %v1842
      %v2385 = vadd.f32 %v2384, %v1843
      %v2386 = vadd.f32 %v2385, %v1844
      %v2387 = vadd.f32 %v2386, %v1845
      %v2388 = vadd.f32 %v2387, %v1846
      %v2389 = vadd.f32 %v2388, %v1847
      %v2390 = vadd.f32 %v2389, %v1848
      %v2391 = vadd.f32 %v2390, %v1849
      %v2392 = vadd.f32 %v2391, %v1850
      %v2393 = vadd.f32 %v2392, %v1851
      %v2394 = vadd.f32 %v2393, %v1852
      %v2395 = vadd.f32 %v2394, %v1853
      %v2396 = vadd.f32 %v2395, %v1854
      %v2397 = vadd.f32 %v2396, %v1855
      %v2398 = vrot.slane %v2397, 4
      %v2399 = vadd.f32 %v2397, %v2398
      %v2400 = vrot.slane %v2399, 2
      %v2401 = vadd.f32 %v2399, %v2400
      %v2402 = vrot.slane %v2401, 1
      %v2403 = vadd.f32 %v2401, %v2402
      %v2404 = vadd.f32 %v1856, %v1857
      %v2405 = vadd.f32 %v2404, %v1858
      %v2406 = vadd.f32 %v2405, %v1859
      %v2407 = vadd.f32 %v2406, %v1860
      %v2408 = vadd.f32 %v2407, %v1861
      %v2409 = vadd.f32 %v2408, %v1862
      %v2410 = vadd.f32 %v2409, %v1863
      %v2411 = vadd.f32 %v2410, %v1864
      %v2412 = vadd.f32 %v2411, %v1865
      %v2413 = vadd.f32 %v2412, %v1866
      %v2414 = vadd.f32 %v2413, %v1867
      %v2415 = vadd.f32 %v2414, %v1868
      %v2416 = vadd.f32 %v2415, %v1869
      %v2417 = vadd.f32 %v2416, %v1870
      %v2418 = vadd.f32 %v2417, %v1871
      %v2419 = vrot.slane %v2418, 4
      %v2420 = vadd.f32 %v2418, %v2419
      %v2421 = vrot.slane %v2420, 2
      %v2422 = vadd.f32 %v2420, %v2421
      %v2423 = vrot.slane %v2422, 1
      %v2424 = vadd.f32 %v2422, %v2423
      %vm2433 = vcmask 1041409
      %v2434 = vsel %vm2433, %v2298, %v2277
      %vm2435 = vcmask 1042434
      %v2436 = vsel %vm2435, %v2319, %v2434
      %vm2437 = vcmask 1043459
      %v2438 = vsel %vm2437, %v2340, %v2436
      %vm2439 = vcmask 1044484
      %v2440 = vsel %vm2439, %v2361, %v2438
      %vm2441 = vcmask 1045509
      %v2442 = vsel %vm2441, %v2382, %v2440
      %vm2443 = vcmask 1046534
      %v2444 = vsel %vm2443, %v2403, %v2442
      %vm2445 = vcmask 1047559
      %v2446 = vsel %vm2445, %v2424, %v2444
      %v2448 = vadd.f32 %v2256, %v2446
      %2449 = vst [vmem:[#allocation3] sm:$0xff] %v2448
      %v2450 = vld [vmem:[#allocation2] sm:$0xff]
      %v2451 = vadd.f32 %v2128, %v2129
      %v2452 = vadd.f32 %v2451, %v2130
      %v2453 = vadd.f32 %v2452, %v2131
      %v2454 = vadd.f32 %v2453, %v2132
      %v2455 = vadd.f32 %v2454, %v2133
      %v2456 = vadd.f32 %v2455, %v2134
      %v2457 = vadd.f32 %v2456, %v2135
      %v2458 = vadd.f32 %v2457, %v2136
      %v2459 = vadd.f32 %v2458, %v2137
      %v2460 = vadd.f32 %v2459, %v2138
      %v2461 = vadd.f32 %v2460, %v2139
      %v2462 = vadd.f32 %v2461, %v2140
      %v2463 = vadd.f32 %v2462, %v2141
      %v2464 = vadd.f32 %v2463, %v2142
      %v2465 = vadd.f32 %v2464, %v2143
      %v2466 = vrot.slane %v2465, 4
      %v2467 = vadd.f32 %v2465, %v2466
      %v2468 = vrot.slane %v2467, 2
      %v2469 = vadd.f32 %v2467, %v2468
      %v2470 = vrot.slane %v2469, 1
      %v2471 = vadd.f32 %v2469, %v2470
      %v2472 = vadd.f32 %v2144, %v2145
      %v2473 = vadd.f32 %v2472, %v2146
      %v2474 = vadd.f32 %v2473, %v2147
      %v2475 = vadd.f32 %v2474, %v2148
      %v2476 = vadd.f32 %v2475, %v2149
      %v2477 = vadd.f32 %v2476, %v2150
      %v2478 = vadd.f32 %v2477, %v2151
      %v2479 = vadd.f32 %v2478, %v2152
      %v2480 = vadd.f32 %v2479, %v2153
      %v2481 = vadd.f32 %v2480, %v2154
      %v2482 = vadd.f32 %v2481, %v2155
      %v2483 = vadd.f32 %v2482, %v2156
      %v2484 = vadd.f32 %v2483, %v2157
      %v2485 = vadd.f32 %v2484, %v2158
      %v2486 = vadd.f32 %v2485, %v2159
      %v2487 = vrot.slane %v2486, 4
      %v2488 = vadd.f32 %v2486, %v2487
      %v2489 = vrot.slane %v2488, 2
      %v2490 = vadd.f32 %v2488, %v2489
      %v2491 = vrot.slane %v2490, 1
      %v2492 = vadd.f32 %v2490, %v2491
      %v2493 = vadd.f32 %v2160, %v2161
      %v2494 = vadd.f32 %v2493, %v2162
      %v2495 = vadd.f32 %v2494, %v2163
      %v2496 = vadd.f32 %v2495, %v2164
      %v2497 = vadd.f32 %v2496, %v2165
      %v2498 = vadd.f32 %v2497, %v2166
      %v2499 = vadd.f32 %v2498, %v2167
      %v2500 = vadd.f32 %v2499, %v2168
      %v2501 = vadd.f32 %v2500, %v2169
      %v2502 = vadd.f32 %v2501, %v2170
      %v2503 = vadd.f32 %v2502, %v2171
      %v2504 = vadd.f32 %v2503, %v2172
      %v2505 = vadd.f32 %v2504, %v2173
      %v2506 = vadd.f32 %v2505, %v2174
      %v2507 = vadd.f32 %v2506, %v2175
      %v2508 = vrot.slane %v2507, 4
      %v2509 = vadd.f32 %v2507, %v2508
      %v2510 = vrot.slane %v2509, 2
      %v2511 = vadd.f32 %v2509, %v2510
      %v2512 = vrot.slane %v2511, 1
      %v2513 = vadd.f32 %v2511, %v2512
      %v2514 = vadd.f32 %v2176, %v2177
      %v2515 = vadd.f32 %v2514, %v2178
      %v2516 = vadd.f32 %v2515, %v2179
      %v2517 = vadd.f32 %v2516, %v2180
      %v2518 = vadd.f32 %v2517, %v2181
      %v2519 = vadd.f32 %v2518, %v2182
      %v2520 = vadd.f32 %v2519, %v2183
      %v2521 = vadd.f32 %v2520, %v2184
      %v2522 = vadd.f32 %v2521, %v2185
      %v2523 = vadd.f32 %v2522, %v2186
      %v2524 = vadd.f32 %v2523, %v2187
      %v2525 = vadd.f32 %v2524, %v2188
      %v2526 = vadd.f32 %v2525, %v2189
      %v2527 = vadd.f32 %v2526, %v2190
      %v2528 = vadd.f32 %v2527, %v2191
      %v2529 = vrot.slane %v2528, 4
      %v2530 = vadd.f32 %v2528, %v2529
      %v2531 = vrot.slane %v2530, 2
      %v2532 = vadd.f32 %v2530, %v2531
      %v2533 = vrot.slane %v2532, 1
      %v2534 = vadd.f32 %v2532, %v2533
      %v2535 = vadd.f32 %v2192, %v2193
      %v2536 = vadd.f32 %v2535, %v2194
      %v2537 = vadd.f32 %v2536, %v2195
      %v2538 = vadd.f32 %v2537, %v2196
      %v2539 = vadd.f32 %v2538, %v2197
      %v2540 = vadd.f32 %v2539, %v2198
      %v2541 = vadd.f32 %v2540, %v2199
      %v2542 = vadd.f32 %v2541, %v2200
      %v2543 = vadd.f32 %v2542, %v2201
      %v2544 = vadd.f32 %v2543, %v2202
      %v2545 = vadd.f32 %v2544, %v2203
      %v2546 = vadd.f32 %v2545, %v2204
      %v2547 = vadd.f32 %v2546, %v2205
      %v2548 = vadd.f32 %v2547, %v2206
      %v2549 = vadd.f32 %v2548, %v2207
      %v2550 = vrot.slane %v2549, 4
      %v2551 = vadd.f32 %v2549, %v2550
      %v2552 = vrot.slane %v2551, 2
      %v2553 = vadd.f32 %v2551, %v2552
      %v2554 = vrot.slane %v2553, 1
      %v2555 = vadd.f32 %v2553, %v2554
      %v2556 = vadd.f32 %v2208, %v2209
      %v2557 = vadd.f32 %v2556, %v2210
      %v2558 = vadd.f32 %v2557, %v2211
      %v2559 = vadd.f32 %v2558, %v2212
      %v2560 = vadd.f32 %v2559, %v2213
      %v2561 = vadd.f32 %v2560, %v2214
      %v2562 = vadd.f32 %v2561, %v2215
      %v2563 = vadd.f32 %v2562, %v2216
      %v2564 = vadd.f32 %v2563, %v2217
      %v2565 = vadd.f32 %v2564, %v2218
      %v2566 = vadd.f32 %v2565, %v2219
      %v2567 = vadd.f32 %v2566, %v2220
      %v2568 = vadd.f32 %v2567, %v2221
      %v2569 = vadd.f32 %v2568, %v2222
      %v2570 = vadd.f32 %v2569, %v2223
      %v2571 = vrot.slane %v2570, 4
      %v2572 = vadd.f32 %v2570, %v2571
      %v2573 = vrot.slane %v2572, 2
      %v2574 = vadd.f32 %v2572, %v2573
      %v2575 = vrot.slane %v2574, 1
      %v2576 = vadd.f32 %v2574, %v2575
      %v2577 = vadd.f32 %v2224, %v2225
      %v2578 = vadd.f32 %v2577, %v2226
      %v2579 = vadd.f32 %v2578, %v2227
      %v2580 = vadd.f32 %v2579, %v2228
      %v2581 = vadd.f32 %v2580, %v2229
      %v2582 = vadd.f32 %v2581, %v2230
      %v2583 = vadd.f32 %v2582, %v2231
      %v2584 = vadd.f32 %v2583, %v2232
      %v2585 = vadd.f32 %v2584, %v2233
      %v2586 = vadd.f32 %v2585, %v2234
      %v2587 = vadd.f32 %v2586, %v2235
      %v2588 = vadd.f32 %v2587, %v2236
      %v2589 = vadd.f32 %v2588, %v2237
      %v2590 = vadd.f32 %v2589, %v2238
      %v2591 = vadd.f32 %v2590, %v2239
      %v2592 = vrot.slane %v2591, 4
      %v2593 = vadd.f32 %v2591, %v2592
      %v2594 = vrot.slane %v2593, 2
      %v2595 = vadd.f32 %v2593, %v2594
      %v2596 = vrot.slane %v2595, 1
      %v2597 = vadd.f32 %v2595, %v2596
      %v2598 = vadd.f32 %v2240, %v2241
      %v2599 = vadd.f32 %v2598, %v2242
      %v2600 = vadd.f32 %v2599, %v2243
      %v2601 = vadd.f32 %v2600, %v2244
      %v2602 = vadd.f32 %v2601, %v2245
      %v2603 = vadd.f32 %v2602, %v2246
      %v2604 = vadd.f32 %v2603, %v2247
      %v2605 = vadd.f32 %v2604, %v2248
      %v2606 = vadd.f32 %v2605, %v2249
      %v2607 = vadd.f32 %v2606, %v2250
      %v2608 = vadd.f32 %v2607, %v2251
      %v2609 = vadd.f32 %v2608, %v2252
      %v2610 = vadd.f32 %v2609, %v2253
      %v2611 = vadd.f32 %v2610, %v2254
      %v2612 = vadd.f32 %v2611, %v2255
      %v2613 = vrot.slane %v2612, 4
      %v2614 = vadd.f32 %v2612, %v2613
      %v2615 = vrot.slane %v2614, 2
      %v2616 = vadd.f32 %v2614, %v2615
      %v2617 = vrot.slane %v2616, 1
      %v2618 = vadd.f32 %v2616, %v2617
      %v2627 = vsel %vm2433, %v2492, %v2471
      %v2628 = vsel %vm2435, %v2513, %v2627
      %v2629 = vsel %vm2437, %v2534, %v2628
      %v2630 = vsel %vm2439, %v2555, %v2629
      %v2631 = vsel %vm2441, %v2576, %v2630
      %v2632 = vsel %vm2443, %v2597, %v2631
      %v2633 = vsel %vm2445, %v2618, %v2632
      %v2635 = vadd.f32 %v2450, %v2633
      %2636 = vst [vmem:[#allocation2] sm:$0xff] %v2635
      // Predicated region
      $region41: #{ant_evaluate.1} parent=35 // pred_check
        %p2637 = pneg %p315
      $region42: #{ant_evaluate.1} parent=35 // pred_check_branch
        %2639 = sbr.rel (%p2637) target = $region44
      $region43: #{ant_evaluate.1} parent=35 // pred_region
        %v2640 = vld [vmem:[#allocation2] sm:$0xff]
        %v2641 = vld [vmem:[#allocation3] sm:$0xff]
        %v2642 = vrcp.pop %v2641
        %v2643 = vmul.f32 %v2640, %v2642
        %v2644 = vld [vmem:[%s293] sm:$0xff]
        %v2645 = vmul.f32 %v2644, %v2643
        %2646 = vst [vmem:[%s314] sm:$0xff] %v2645
      $region44: #{ant_evaluate.1} parent=35 // pred_fallthru
        _
      %p2647 = scmp.lt.s32.totalorder %s20, 4
      %s2648 = scalar_select %p2647, %s20, 4
      %p2649 = scmp.lt.s32.totalorder %s21, 0
      %s2650 = scalar_select %p2649, %s21, 0
      %s2651 = sadd.s32 %s2650, %s2648
      %s2652 = smul.addr %s2651, 8
      %s2653 = scalar_lea.vmem %s4, %s2652
      // Predicated region
      $region45: #{ant_evaluate.1} parent=35 // pred_check
        %p2654 = pneg %p166
      $region46: #{ant_evaluate.1} parent=35 // pred_check_branch
        %2656 = sbr.rel (%p2654) target = $region48
      $region47: #{ant_evaluate.1} parent=35 // pred_region
        _
      $region48: #{ant_evaluate.1} parent=35 // pred_fallthru
        _
    $region36: #{ant_evaluate.1} parent=5 // pred_fallthru
      _
    %p2657 = scmp.le.s32.totalorder 2, %s10
    // Predicated region
    $region49: #{ant_evaluate.1} parent=5 // pred_check
      %p2658 = pneg %p2657
    $region50: #{ant_evaluate.1} parent=5 // pred_check_branch
      %2660 = sbr.rel (%p2658) target = $region52
    $region51: #{ant_evaluate.1} parent=5 // pred_region
      %s2661 = ssub.s32 %s10, 2
      // Predicated region
      $region53: #{ant_evaluate.1} parent=51 // pred_check
        %p2662 = pneg %p172
      $region54: #{ant_evaluate.1} parent=51 // pred_check_branch
        %2664 = sbr.rel (%p2662) target = $region56
      $region55: #{ant_evaluate.1} parent=51 // pred_region
        %p2665 = scmp.lt.s32.totalorder %s23, 4
        %s2666 = scalar_select %p2665, %s23, 4
        %p2667 = scmp.lt.s32.totalorder %s24, 0
        %s2668 = scalar_select %p2667, %s24, 0
        %s2669 = sadd.s32 %s2668, %s2666
        %s2670 = smul.addr %s2669, 8
        %s2671 = scalar_lea.vmem %s4, %s2670
      $region56: #{ant_evaluate.1} parent=51 // pred_fallthru
        _
    $region52: #{ant_evaluate.1} parent=5 // pred_fallthru
      _
  $region6: #{ant_evaluate.1} parent=0 // loop_footer
    %s14 = sadd.s32 1, %s10
  $region7: #{ant_evaluate.1} parent=0 // loop_footer_branch
    %9 = sbr.rel target = $region3
  $region8: #{ant_evaluate.1} parent=0 // loop_exit
    _

</llo_original>
